<compile_context>
chip_gen: v5e
topology: v5e:2x2
jax: 0.10.0
libtpu: 0.0.40
codegen_flags: <defaults>
</compile_context>

<pallas_src>
import functools

import jax
import jax.numpy as jnp
from jax.experimental import pallas as pl
from jax.experimental.pallas import tpu as pltpu

_BIG = 1e30  # distance assigned to padded codewords: can never win the argmin


def _vq_kernel(per_point_rb, inv_ndim, cb_size, *refs):
    if per_point_rb:
        x_ref, cbt_ref, cb_ref, csqb_ref, rb_ref, xhat_ref, oh_ref, dist_ref = refs
    else:
        x_ref, cbt_ref, cb_ref, csqb_ref, xhat_ref, oh_ref, dist_ref = refs

    x = x_ref[0]          # (TILE_P, D)   streamed
    cb_t = cbt_ref[0]     # (D, C_pad)    resident, already scaled by -2/ndim
    cb = cb_ref[0]        # (C_pad, D)    resident (padded rows are zero)
    csq_b = csqb_ref[0]   # (1, C_pad)    (||cb||^2 [+ rb]) / ndim, _BIG on pad cols

    # dist = (||x||^2 + ||cb||^2 - 2 x.cb [+ rb]) / ndim, with the scales folded
    # into csq_b / cb_t / the xsq column so only ~3 full-width VPU passes remain.
    xsq = jnp.sum(x * x, axis=-1, keepdims=True) * inv_ndim           # (TILE_P, 1)
    dots = jnp.dot(x, cb_t, preferred_element_type=jnp.float32,
                   precision=jax.lax.Precision.HIGHEST)               # (TILE_P, C_pad)
    dist = (csq_b + xsq) + dots                                       # (TILE_P, C_pad)
    if per_point_rb:
        dist = dist + rb_ref[0] * inv_ndim

    # argmin over codewords (first minimum, like torch.argmin) + one-hot via a
    # broadcast compare against a single (1, C) iota row.
    idx = jnp.argmin(dist, axis=-1, keepdims=True)                    # (TILE_P, 1)
    col = jax.lax.broadcasted_iota(jnp.int32, (1, dist.shape[-1]), 1) # (1, C_pad)
    one_hot = (col == idx).astype(jnp.float32)                        # (TILE_P, C_pad)

    # x_hat = one_hot @ code_book  (padded codebook rows are zero -> no effect)
    x_hat = jnp.dot(one_hot, cb, preferred_element_type=jnp.float32,
                    precision=jax.lax.Precision.HIGHEST)              # (TILE_P, D)

    xhat_ref[0] = x_hat.astype(xhat_ref.dtype)
    # Outputs are written at cb_size width (no wrapper-side slicing); when
    # cb_size is a multiple of 128 these are fully dense vst stores.
    oh_ref[0] = one_hot[:, :cb_size].astype(oh_ref.dtype)
    dist_ref[0] = dist[:, :cb_size].astype(dist_ref.dtype)


def _round_up(v, m):
    return ((v + m - 1) // m) * m


def _vmem_budget():
    """Generation-aware (VMEM limit, tile-sizing budget, tile cap)."""
    cap = 64 * 1024 * 1024  # conservative default = v7x per-TensorCore VMEM
    try:
        info = pltpu.get_tpu_info()
        for name in ("vmem_capacity_bytes", "vmem_bytes", "vmem_size_bytes"):
            v = getattr(info, name, None)
            if v:
                cap = int(v)
                break
    except Exception:
        pass
    limit = min(3 * cap // 4, 64 * 1024 * 1024)   # 48 MiB on v7x, 64 MiB on v5e/v6e
    budget = (3 * limit) // 4                     # headroom for compiler scratch
    tile_cap = 2048 if cap >= 100 * 1024 * 1024 else 1024
    return limit, budget, tile_cap


def _choose_tile_p(npoint, ndim, cb_size, c_pad, has_pp_rb, budget_bytes, tile_cap):
    # Streamed per-row f32 bytes, double-buffered: x, x_hat, one_hot, dist (+ rb).
    stream_row = 2 * 4 * (2 * ndim + 2 * cb_size + (c_pad if has_pp_rb else 0))
    # In-kernel f32 intermediates at padded width (dots / dist / one_hot).
    live_row = 4 * 4 * c_pad
    # Resident codebook + transposed codebook + csq (double-buffered inputs).
    resident = 2 * 4 * (2 * c_pad * ndim + c_pad)
    tile = (budget_bytes - resident) // max(stream_row + live_row, 1)
    tile = max(8, min(int(tile), tile_cap))
    if tile >= npoint:
        return int(npoint)          # single full-extent block (always a legal block dim)
    return max(8, (tile // 8) * 8)  # multiple of 8 sublanes (f32 tiling)


def full_search_vq(x, code_book, rate_bias=None, *, tile_p=None):
    """Pallas implementation of FullSearchVectorQuantization.forward."""
    ncb, npoint, ndim = x.shape
    ncb2, cb_size, ndim2 = code_book.shape
    assert (ncb, ndim) == (ncb2, ndim2)

    inv_ndim = 1.0 / float(ndim)
    c_pad = _round_up(cb_size, 128)  # lane-dense internal codeword axis

    x_f = x.astype(jnp.float32)
    cb_f = code_book.astype(jnp.float32)
    cb_pad = cb_f
    if c_pad != cb_size:
        cb_pad = jnp.pad(cb_f, ((0, 0), (0, c_pad - cb_size), (0, 0)))

    # Pre-transposed, pre-scaled RHS for the distance matmul (tiny, resident):
    # dots = x @ (cb.T * (-2/ndim)).
    cb_t = jnp.transpose(cb_pad, (0, 2, 1)) * (-2.0 * inv_ndim)       # (ncb, ndim, c_pad)

    csq = jnp.sum(cb_f * cb_f, axis=-1)                               # (ncb, cb_size)

    per_point_rb = False
    rb_stream = None
    if rate_bias is not None:
        rb = jnp.asarray(rate_bias, dtype=jnp.float32)
        while rb.ndim < 3:
            rb = rb[None]
        if rb.shape[1] == 1:
            # Per-codeword bias: fold into the resident csq term (free in-kernel).
            csq = csq + jnp.broadcast_to(rb, (ncb, 1, cb_size))[:, 0, :]
        else:
            # Fully general per-point bias: streamed like x.
            per_point_rb = True
            rb_stream = jnp.broadcast_to(rb, (ncb, npoint, cb_size))
            if c_pad != cb_size:
                rb_stream = jnp.pad(rb_stream, ((0, 0), (0, 0), (0, c_pad - cb_size)))

    csq_b = csq * inv_ndim
    if c_pad != cb_size:
        csq_b = jnp.pad(csq_b, ((0, 0), (0, c_pad - cb_size)), constant_values=_BIG)
    csq_b = csq_b[:, None, :]                                         # (ncb, 1, c_pad)

    vmem_limit, budget, tile_cap = _vmem_budget()
    if tile_p is None:
        tile_p = _choose_tile_p(npoint, ndim, cb_size, c_pad, per_point_rb,
                                budget, tile_cap)
    n_ptiles = pl.cdiv(npoint, tile_p)   # ragged last block handled by Pallas masking

    in_specs = [
        pl.BlockSpec((1, tile_p, ndim), lambda a, p: (a, p, 0)),   # x tile (streamed)
        pl.BlockSpec((1, ndim, c_pad), lambda a, p: (a, 0, 0)),    # cb^T (resident over p)
        pl.BlockSpec((1, c_pad, ndim), lambda a, p: (a, 0, 0)),    # cb   (resident over p)
        pl.BlockSpec((1, 1, c_pad), lambda a, p: (a, 0, 0)),       # csq_b (resident over p)
    ]
    inputs = [x_f, cb_t, cb_pad, csq_b]
    if per_point_rb:
        in_specs.append(pl.BlockSpec((1, tile_p, c_pad), lambda a, p: (a, p, 0)))
        inputs.append(rb_stream)

    # Outputs kept float32 to match the torch module.
    # TODO(synk): emitting one_hot/dist in bf16 (or returning int32 indices)
    # would roughly halve the HBM write traffic that dominates this kernel, but
    # changes the module's output contract.
    out_shapes = (
        jax.ShapeDtypeStruct((ncb, npoint, ndim), jnp.float32),      # x_hat
        jax.ShapeDtypeStruct((ncb, npoint, cb_size), jnp.float32),   # one_hot
        jax.ShapeDtypeStruct((ncb, npoint, cb_size), jnp.float32),   # dist
    )
    out_specs = [
        pl.BlockSpec((1, tile_p, ndim), lambda a, p: (a, p, 0)),
        pl.BlockSpec((1, tile_p, cb_size), lambda a, p: (a, p, 0)),
        pl.BlockSpec((1, tile_p, cb_size), lambda a, p: (a, p, 0)),
    ]

    grid_spec = pltpu.PrefetchScalarGridSpec(
        num_scalar_prefetch=0,
        grid=(ncb, n_ptiles),
        in_specs=in_specs,
        out_specs=out_specs,
    )

    kernel = functools.partial(_vq_kernel, per_point_rb, inv_ndim, cb_size)

    x_hat, one_hot, dist = pl.pallas_call(
        kernel,
        out_shape=out_shapes,
        grid_spec=grid_spec,
        compiler_params=pltpu.CompilerParams(
            dimension_semantics=("parallel", "parallel"),
            vmem_limit_bytes=vmem_limit,
        ),
    )(*inputs)

    return x_hat, one_hot, dist


def _reference_vq(x, code_book, rate_bias=None):
    """Plain-JAX replica of the PyTorch forward, for verification."""
    ndim = x.shape[-1]
    hp = jax.lax.Precision.HIGHEST
    dist = (jnp.sum(x ** 2, axis=2)[..., None]
            + jnp.sum(code_book ** 2, axis=2)[:, None, :]
            - 2.0 * jnp.einsum('abc,adc->abd', x, code_book, precision=hp))
    if rate_bias is None:
        dist = dist / ndim
    else:
        dist = (rate_bias + dist) / ndim
    idx = jnp.argmin(dist, axis=-1)
    one_hot = jax.nn.one_hot(idx, code_book.shape[1], dtype=dist.dtype)
    x_hat = jnp.einsum('abd,adc->abc', one_hot, code_book, precision=hp)
    return x_hat, one_hot, dist


if __name__ == "__main__":
    # Small shapes consistent with the module: ncb codebooks, cb_size codewords
    # of dimension ndim, npoint vectors per codebook (npoint not a multiple of 8).
    ncb, cb_size, ndim, npoint = 2, 16, 8, 100

    key = jax.random.PRNGKey(0)
    k_cb, k_x, k_rb = jax.random.split(key, 3)

    # uniform(-1/2, 1/2), same as torch's code_book.uniform_(-0.5, 0.5).
    code_book = jax.random.uniform(
        k_cb, (ncb, cb_size, ndim), dtype=jnp.float32, minval=-0.5, maxval=0.5)
    x = jax.random.normal(k_x, (ncb, npoint, ndim), dtype=jnp.float32)

    # --- rate_bias = None path (auto tile: single full-extent p block) ---
    x_hat, one_hot, dist = full_search_vq(x, code_book)
    jax.block_until_ready((x_hat, one_hot, dist))
    rx_hat, rone_hot, rdist = _reference_vq(x, code_book)
    assert dist.shape == (ncb, npoint, cb_size)
    assert jnp.allclose(dist, rdist, atol=1e-5, rtol=1e-5)
    assert jnp.allclose(one_hot, rone_hot)
    assert jnp.allclose(x_hat, rx_hat, atol=1e-5, rtol=1e-5)

    # --- per-codeword rate_bias path, forced small tile so the grid has several
    #     p blocks and a ragged (masked) last block ---
    rate_bias = jax.random.normal(k_rb, (ncb, 1, cb_size), dtype=jnp.float32)
    x_hat2, one_hot2, dist2 = full_search_vq(x, code_book, rate_bias, tile_p=32)
    jax.block_until_ready((x_hat2, one_hot2, dist2))
    rx2, ro2, rd2 = _reference_vq(x, code_book, rate_bias)
    assert jnp.allclose(dist2, rd2, atol=1e-5, rtol=1e-5)
    assert jnp.allclose(one_hot2, ro2)
    assert jnp.allclose(x_hat2, rx2, atol=1e-5, rtol=1e-5)

    print("KERNEL_OK")
</pallas_src>

<mosaic_0001>
module attributes {stable_mosaic.version = 11 : i64} {
  func.func @_vq_kernel(%arg0: i32, %arg1: i32, %arg2: memref<1x100x8xf32, #tpu.memory_space<vmem>>, %arg3: memref<1x8x128xf32, #tpu.memory_space<vmem>>, %arg4: memref<1x128x8xf32, #tpu.memory_space<vmem>>, %arg5: memref<1x1x128xf32, #tpu.memory_space<vmem>>, %arg6: memref<1x100x8xf32, #tpu.memory_space<vmem>>, %arg7: memref<1x100x16xf32, #tpu.memory_space<vmem>>, %arg8: memref<1x100x16xf32, #tpu.memory_space<vmem>>) attributes {dimension_semantics = [#tpu.dimension_semantics<parallel>, #tpu.dimension_semantics<parallel>], iteration_bounds = array<i64: 2, 1>, scalar_prefetch = 0 : i64, scratch_operands = 0 : i64, tpu.core_type = #tpu.core_type<tc>, window_params = [{transform_indices = @transform_0, window_bounds = array<i64: 1, 100, 8>}, {transform_indices = @transform_1, window_bounds = array<i64: 1, 8, 128>}, {transform_indices = @transform_2, window_bounds = array<i64: 1, 128, 8>}, {transform_indices = @transform_3, window_bounds = array<i64: 1, 1, 128>}, {transform_indices = @transform_4, window_bounds = array<i64: 1, 100, 8>}, {transform_indices = @transform_5, window_bounds = array<i64: 1, 100, 16>}, {transform_indices = @transform_6, window_bounds = array<i64: 1, 100, 16>}]} {
    %c0 = arith.constant 0 : index
    %c0_0 = arith.constant 0 : index
    %c0_1 = arith.constant 0 : index
    %0 = vector.load %arg2[%c0, %c0_0, %c0_1] : memref<1x100x8xf32, #tpu.memory_space<vmem>>, vector<1x100x8xf32>
    %1 = vector.shape_cast %0 : vector<1x100x8xf32> to vector<100x8xf32>
    %c0_2 = arith.constant 0 : index
    %c0_3 = arith.constant 0 : index
    %c0_4 = arith.constant 0 : index
    %2 = vector.load %arg3[%c0_2, %c0_3, %c0_4] : memref<1x8x128xf32, #tpu.memory_space<vmem>>, vector<1x8x128xf32>
    %3 = vector.shape_cast %2 : vector<1x8x128xf32> to vector<8x128xf32>
    %c0_5 = arith.constant 0 : index
    %c0_6 = arith.constant 0 : index
    %c0_7 = arith.constant 0 : index
    %4 = vector.load %arg4[%c0_5, %c0_6, %c0_7] : memref<1x128x8xf32, #tpu.memory_space<vmem>>, vector<1x128x8xf32>
    %5 = vector.shape_cast %4 : vector<1x128x8xf32> to vector<128x8xf32>
    %c0_8 = arith.constant 0 : index
    %c0_9 = arith.constant 0 : index
    %c0_10 = arith.constant 0 : index
    %6 = vector.load %arg5[%c0_8, %c0_9, %c0_10] : memref<1x1x128xf32, #tpu.memory_space<vmem>>, vector<1x1x128xf32>
    %7 = vector.shape_cast %6 : vector<1x1x128xf32> to vector<1x128xf32>
    %8 = arith.mulf %1, %1 : vector<100x8xf32>
    %cst = arith.constant dense<0.000000e+00> : vector<100xf32>
    %9 = vector.multi_reduction <add>, %8, %cst [1] : vector<100x8xf32> to vector<100xf32>
    %10 = vector.shape_cast %9 : vector<100xf32> to vector<100x1xf32>
    %cst_11 = arith.constant 1.250000e-01 : f32
    %11 = vector.broadcast %cst_11 : f32 to vector<100x1xf32>
    %12 = arith.mulf %10, %11 : vector<100x1xf32>
    %cst_12 = arith.constant dense<0.000000e+00> : vector<100x128xf32>
    %13 = tpu.matmul %1, %3, %cst_12 {dimension_numbers = #tpu.dot_dimension_numbers<[1], [0], [0], [1], [0, 0, 1, 1], [], []>, precision = #tpu.contract_precision<fp32>} : vector<100x8xf32>, vector<8x128xf32>, vector<100x128xf32> -> vector<100x128xf32>
    %14 = vector.broadcast %7 : vector<1x128xf32> to vector<100x128xf32>
    %15 = vector.broadcast %12 : vector<100x1xf32> to vector<100x128xf32>
    %16 = arith.addf %14, %15 : vector<100x128xf32>
    %17 = arith.addf %16, %13 : vector<100x128xf32>
    %18 = tpu.reduce_index %17 {axis = 1 : i32, kind = #tpu.reduction_kind<arg_min>} : vector<100x128xf32> -> vector<100xi32>
    %19 = vector.shape_cast %18 : vector<100xi32> to vector<100x1xi32>
    %20 = tpu.iota {dimensions = array<i32: 1>} : vector<1x128xi32>
    %21 = vector.broadcast %20 : vector<1x128xi32> to vector<100x128xi32>
    %22 = vector.broadcast %19 : vector<100x1xi32> to vector<100x128xi32>
    %23 = arith.cmpi eq, %21, %22 : vector<100x128xi32>
    %24 = arith.extui %23 : vector<100x128xi1> to vector<100x128xi32>
    %25 = arith.sitofp %24 : vector<100x128xi32> to vector<100x128xf32>
    %cst_13 = arith.constant dense<0.000000e+00> : vector<100x8xf32>
    %26 = tpu.matmul %25, %5, %cst_13 {dimension_numbers = #tpu.dot_dimension_numbers<[1], [0], [0], [1], [0, 0, 1, 1], [], []>, precision = #tpu.contract_precision<fp32>} : vector<100x128xf32>, vector<128x8xf32>, vector<100x8xf32> -> vector<100x8xf32>
    %c0_14 = arith.constant 0 : index
    %c0_15 = arith.constant 0 : index
    %c0_16 = arith.constant 0 : index
    %27 = vector.load %arg6[%c0_14, %c0_15, %c0_16] : memref<1x100x8xf32, #tpu.memory_space<vmem>>, vector<1x100x8xf32>
    %28 = vector.shape_cast %27 : vector<1x100x8xf32> to vector<100x8xf32>
    %29 = vector.shape_cast %26 : vector<100x8xf32> to vector<1x100x8xf32>
    tpu.vector_store %arg6[%c0_14, %c0_15, %c0_16], %29 {strides = array<i32>} : memref<1x100x8xf32, #tpu.memory_space<vmem>>, vector<1x100x8xf32>,
    %30 = vector.extract_strided_slice %25 {offsets = [0, 0], sizes = [100, 16], strides = [1, 1]} : vector<100x128xf32> to vector<100x16xf32>
    %c0_17 = arith.constant 0 : index
    %c0_18 = arith.constant 0 : index
    %c0_19 = arith.constant 0 : index
    %31 = vector.load %arg7[%c0_17, %c0_18, %c0_19] : memref<1x100x16xf32, #tpu.memory_space<vmem>>, vector<1x100x16xf32>
    %32 = vector.shape_cast %31 : vector<1x100x16xf32> to vector<100x16xf32>
    %33 = vector.shape_cast %30 : vector<100x16xf32> to vector<1x100x16xf32>
    tpu.vector_store %arg7[%c0_17, %c0_18, %c0_19], %33 {strides = array<i32>} : memref<1x100x16xf32, #tpu.memory_space<vmem>>, vector<1x100x16xf32>,
    %34 = vector.extract_strided_slice %17 {offsets = [0, 0], sizes = [100, 16], strides = [1, 1]} : vector<100x128xf32> to vector<100x16xf32>
    %c0_20 = arith.constant 0 : index
    %c0_21 = arith.constant 0 : index
    %c0_22 = arith.constant 0 : index
    %35 = vector.load %arg8[%c0_20, %c0_21, %c0_22] : memref<1x100x16xf32, #tpu.memory_space<vmem>>, vector<1x100x16xf32>
    %36 = vector.shape_cast %35 : vector<1x100x16xf32> to vector<100x16xf32>
    %37 = vector.shape_cast %34 : vector<100x16xf32> to vector<1x100x16xf32>
    tpu.vector_store %arg8[%c0_20, %c0_21, %c0_22], %37 {strides = array<i32>} : memref<1x100x16xf32, #tpu.memory_space<vmem>>, vector<1x100x16xf32>,
    return
  }
  func.func @transform_0(%arg0: i32, %arg1: i32) -> (i32, i32, i32) {
    %c0_i32 = arith.constant 0 : i32
    %c0_i32_0 = arith.constant 0 : i32
    return %arg0, %arg1, %c0_i32 : i32, i32, i32
  }
  func.func @transform_1(%arg0: i32, %arg1: i32) -> (i32, i32, i32) {
    %c0_i32 = arith.constant 0 : i32
    %c0_i32_0 = arith.constant 0 : i32
    %c0_i32_1 = arith.constant 0 : i32
    return %arg0, %c0_i32, %c0_i32_0 : i32, i32, i32
  }
  func.func @transform_2(%arg0: i32, %arg1: i32) -> (i32, i32, i32) {
    %c0_i32 = arith.constant 0 : i32
    %c0_i32_0 = arith.constant 0 : i32
    %c0_i32_1 = arith.constant 0 : i32
    return %arg0, %c0_i32, %c0_i32_0 : i32, i32, i32
  }
  func.func @transform_3(%arg0: i32, %arg1: i32) -> (i32, i32, i32) {
    %c0_i32 = arith.constant 0 : i32
    %c0_i32_0 = arith.constant 0 : i32
    %c0_i32_1 = arith.constant 0 : i32
    return %arg0, %c0_i32, %c0_i32_0 : i32, i32, i32
  }
  func.func @transform_4(%arg0: i32, %arg1: i32) -> (i32, i32, i32) {
    %c0_i32 = arith.constant 0 : i32
    %c0_i32_0 = arith.constant 0 : i32
    return %arg0, %arg1, %c0_i32 : i32, i32, i32
  }
  func.func @transform_5(%arg0: i32, %arg1: i32) -> (i32, i32, i32) {
    %c0_i32 = arith.constant 0 : i32
    %c0_i32_0 = arith.constant 0 : i32
    return %arg0, %arg1, %c0_i32 : i32, i32, i32
  }
  func.func @transform_6(%arg0: i32, %arg1: i32) -> (i32, i32, i32) {
    %c0_i32 = arith.constant 0 : i32
    %c0_i32_0 = arith.constant 0 : i32
    return %arg0, %arg1, %c0_i32 : i32, i32, i32
  }
}

</mosaic_0001>

<llo_original>
// kernel: tpu_custom_call.1
$region0: #{tpu_custom_call.1}
  #allocation0 [shape = 'u32[]', space=smem, size = 0x4, offset = 0x4, fixed_abs, tag = 'smem constant byte address 0x4 - core index']
  #allocation1 [shape = 'u32[72,128]{1,0:T(1,128)}', space=vmem, size = 0x9000, scoped, tag = 'internal scratch']
  %s0 = inlined_call_operand.vmem [shape: f32[2,100,8], index: 0, kind: input, shape index: {}]
  %s1 = inlined_call_operand.vmem [shape: f32[2,8,128], index: 1, kind: input, shape index: {}]
  %s2 = inlined_call_operand.vmem [shape: f32[2,128,8], index: 2, kind: input, shape index: {}]
  %s3 = inlined_call_operand.vmem [shape: f32[2,1,128], index: 3, kind: input, shape index: {}]
  %s4 = inlined_call_operand.vmem [shape: f32[2,100,8], index: 4, kind: output, shape index: {0}]
  %s5 = inlined_call_operand.vmem [shape: f32[2,100,16], index: 5, kind: output, shape index: {1}]
  %s6 = inlined_call_operand.vmem [shape: f32[2,100,16], index: 6, kind: output, shape index: {2}]
  %7 = xla_tuple %s4, %s5, %s6
  %s8 = sld [smem:[#allocation0]]
  $region65: #{tpu_custom_call.1} parent=0
    _
  %s10 = ssub.s32 1, %s8
  %s11 = scalar_select 0, %s10, %s8
  loop: start=0, step=1, limit=4
  $region2: #{tpu_custom_call.1} parent=0 // loop_pre_header
    _
  $region3: #{tpu_custom_call.1} parent=0 // loop_header
    %s13 = sphi 0, %s17
    %p14 = scmp.ge.s32.totalorder %s13, 4
    %s20 = sphi 0, %s32
    %s21 = sphi 0, %s28
    %s22 = sphi 0, %s20
    %s23 = sphi 0, %s21
    %s24 = sphi 0, %s22
    %s25 = sphi 0, %s23
    %s37 = sphi 0, %s39
    %s40 = sphi 0, %s37
    %s41 = sphi 0, %s40
    %s57 = sphi 0, %s41
    %s63 = sphi 0, %s65
    %s66 = sphi 0, %s63
    %s67 = sphi 0, %s66
    %s83 = sphi 0, %s67
    %s89 = sphi 0, %s91
    %s92 = sphi 0, %s89
    %s93 = sphi 0, %s92
    %s109 = sphi 0, %s93
    %s115 = sphi 0, %s117
    %s118 = sphi 0, %s115
    %s119 = sphi 0, %s118
    %s135 = sphi 0, %s119
    %s143 = sphi 0, %s145
    %s146 = sphi 0, %s143
    %s147 = sphi 0, %s146
    %s163 = sphi 0, %s147
    %s171 = sphi 0, %s173
    %s174 = sphi 0, %s171
    %s175 = sphi 0, %s174
    %s191 = sphi 0, %s175
    %s199 = sphi 0, %s201
    %s202 = sphi 0, %s199
    %s203 = sphi 0, %s202
    %s219 = sphi 0, %s203
  $region4: #{tpu_custom_call.1} parent=0 // loop_header_branch
    %16 = sbr.rel (%p14) target = $region8
  $region5: #{tpu_custom_call.1} parent=0 // loop_body
    %s18 = ssub.s32 %s13, 1
    %s19 = ssub.s32 %s13, 2
    %s26 = sadd.s32 1, %s21
    %p27 = scmp.ge.s32.totalorder %s26, 1
    %s28 = scalar_select %p27, 0, %s26
    %s29 = sadd.s32 1, %s20
    %s30 = scalar_select %p27, %s29, %s20
    %p31 = scmp.ge.s32.totalorder %s30, 2
    %s32 = scalar_select %p31, 0, %s30
    %s33 = ssub.s32 %s20, %s32
    %s34 = ssub.s32 %s21, %s28
    %s35 = sor.u32 %s33, %s34
    %p36 = scmp.eq.s32.totalorder %s35, 0
    %s38 = sadd.s32 %s37, 1
    %s39 = scalar_select %p36, %s37, %s38
    %p42 = pneg %p36
    %p43 = scmp.eq.s32.totalorder %s13, 1
    %p44 = por %p42, %p43
    %p45 = scmp.ne.s32.totalorder %s37, %s40
    %p46 = scmp.eq.s32.totalorder %s13, 0
    %p47 = por %p45, %p46
    %p48 = scmp.ne.s32.totalorder %s37, %s40
    %p49 = scmp.eq.s32.totalorder %s18, 1
    %p50 = por %p48, %p49
    %p51 = scmp.ne.s32.totalorder %s40, %s41
    %p52 = scmp.eq.s32.totalorder %s18, 0
    %p53 = por %p51, %p52
    %p54 = scmp.ne.s32.totalorder %s40, %s41
    %p55 = scmp.eq.s32.totalorder %s19, 1
    %p56 = por %p54, %p55
    %p58 = scmp.ne.s32.totalorder %s41, %s57
    %p59 = scmp.eq.s32.totalorder %s19, 0
    %p60 = por %p58, %p59
    %s61 = ssub.s32 %s20, %s32
    %p62 = scmp.eq.s32.totalorder %s61, 0
    %s64 = sadd.s32 %s63, 1
    %s65 = scalar_select %p62, %s63, %s64
    %p68 = pneg %p62
    %p69 = scmp.eq.s32.totalorder %s13, 1
    %p70 = por %p68, %p69
    %p71 = scmp.ne.s32.totalorder %s63, %s66
    %p72 = scmp.eq.s32.totalorder %s13, 0
    %p73 = por %p71, %p72
    %p74 = scmp.ne.s32.totalorder %s63, %s66
    %p75 = scmp.eq.s32.totalorder %s18, 1
    %p76 = por %p74, %p75
    %p77 = scmp.ne.s32.totalorder %s66, %s67
    %p78 = scmp.eq.s32.totalorder %s18, 0
    %p79 = por %p77, %p78
    %p80 = scmp.ne.s32.totalorder %s66, %s67
    %p81 = scmp.eq.s32.totalorder %s19, 1
    %p82 = por %p80, %p81
    %p84 = scmp.ne.s32.totalorder %s67, %s83
    %p85 = scmp.eq.s32.totalorder %s19, 0
    %p86 = por %p84, %p85
    %s87 = ssub.s32 %s20, %s32
    %p88 = scmp.eq.s32.totalorder %s87, 0
    %s90 = sadd.s32 %s89, 1
    %s91 = scalar_select %p88, %s89, %s90
    %p94 = pneg %p88
    %p95 = scmp.eq.s32.totalorder %s13, 1
    %p96 = por %p94, %p95
    %p97 = scmp.ne.s32.totalorder %s89, %s92
    %p98 = scmp.eq.s32.totalorder %s13, 0
    %p99 = por %p97, %p98
    %p100 = scmp.ne.s32.totalorder %s89, %s92
    %p101 = scmp.eq.s32.totalorder %s18, 1
    %p102 = por %p100, %p101
    %p103 = scmp.ne.s32.totalorder %s92, %s93
    %p104 = scmp.eq.s32.totalorder %s18, 0
    %p105 = por %p103, %p104
    %p106 = scmp.ne.s32.totalorder %s92, %s93
    %p107 = scmp.eq.s32.totalorder %s19, 1
    %p108 = por %p106, %p107
    %p110 = scmp.ne.s32.totalorder %s93, %s109
    %p111 = scmp.eq.s32.totalorder %s19, 0
    %p112 = por %p110, %p111
    %s113 = ssub.s32 %s20, %s32
    %p114 = scmp.eq.s32.totalorder %s113, 0
    %s116 = sadd.s32 %s115, 1
    %s117 = scalar_select %p114, %s115, %s116
    %p120 = pneg %p114
    %p121 = scmp.eq.s32.totalorder %s13, 1
    %p122 = por %p120, %p121
    %p123 = scmp.ne.s32.totalorder %s115, %s118
    %p124 = scmp.eq.s32.totalorder %s13, 0
    %p125 = por %p123, %p124
    %p126 = scmp.ne.s32.totalorder %s115, %s118
    %p127 = scmp.eq.s32.totalorder %s18, 1
    %p128 = por %p126, %p127
    %p129 = scmp.ne.s32.totalorder %s118, %s119
    %p130 = scmp.eq.s32.totalorder %s18, 0
    %p131 = por %p129, %p130
    %p132 = scmp.ne.s32.totalorder %s118, %s119
    %p133 = scmp.eq.s32.totalorder %s19, 1
    %p134 = por %p132, %p133
    %p136 = scmp.ne.s32.totalorder %s119, %s135
    %p137 = scmp.eq.s32.totalorder %s19, 0
    %p138 = por %p136, %p137
    %s139 = ssub.s32 %s20, %s32
    %s140 = ssub.s32 %s21, %s28
    %s141 = sor.u32 %s139, %s140
    %p142 = scmp.eq.s32.totalorder %s141, 0
    %s144 = sadd.s32 %s143, 1
    %s145 = scalar_select %p142, %s143, %s144
    %p148 = pneg %p142
    %p149 = scmp.eq.s32.totalorder %s13, 1
    %p150 = por %p148, %p149
    %p151 = scmp.ne.s32.totalorder %s143, %s146
    %p152 = scmp.eq.s32.totalorder %s13, 0
    %p153 = por %p151, %p152
    %p154 = scmp.ne.s32.totalorder %s143, %s146
    %p155 = scmp.eq.s32.totalorder %s18, 1
    %p156 = por %p154, %p155
    %p157 = scmp.ne.s32.totalorder %s146, %s147
    %p158 = scmp.eq.s32.totalorder %s18, 0
    %p159 = por %p157, %p158
    %p160 = scmp.ne.s32.totalorder %s146, %s147
    %p161 = scmp.eq.s32.totalorder %s19, 1
    %p162 = por %p160, %p161
    %p164 = scmp.ne.s32.totalorder %s147, %s163
    %p165 = scmp.eq.s32.totalorder %s19, 0
    %p166 = por %p164, %p165
    %s167 = ssub.s32 %s20, %s32
    %s168 = ssub.s32 %s21, %s28
    %s169 = sor.u32 %s167, %s168
    %p170 = scmp.eq.s32.totalorder %s169, 0
    %s172 = sadd.s32 %s171, 1
    %s173 = scalar_select %p170, %s171, %s172
    %p176 = pneg %p170
    %p177 = scmp.eq.s32.totalorder %s13, 1
    %p178 = por %p176, %p177
    %p179 = scmp.ne.s32.totalorder %s171, %s174
    %p180 = scmp.eq.s32.totalorder %s13, 0
    %p181 = por %p179, %p180
    %p182 = scmp.ne.s32.totalorder %s171, %s174
    %p183 = scmp.eq.s32.totalorder %s18, 1
    %p184 = por %p182, %p183
    %p185 = scmp.ne.s32.totalorder %s174, %s175
    %p186 = scmp.eq.s32.totalorder %s18, 0
    %p187 = por %p185, %p186
    %p188 = scmp.ne.s32.totalorder %s174, %s175
    %p189 = scmp.eq.s32.totalorder %s19, 1
    %p190 = por %p188, %p189
    %p192 = scmp.ne.s32.totalorder %s175, %s191
    %p193 = scmp.eq.s32.totalorder %s19, 0
    %p194 = por %p192, %p193
    %s195 = ssub.s32 %s20, %s32
    %s196 = ssub.s32 %s21, %s28
    %s197 = sor.u32 %s195, %s196
    %p198 = scmp.eq.s32.totalorder %s197, 0
    %s200 = sadd.s32 %s199, 1
    %s201 = scalar_select %p198, %s199, %s200
    %p204 = pneg %p198
    %p205 = scmp.eq.s32.totalorder %s13, 1
    %p206 = por %p204, %p205
    %p207 = scmp.ne.s32.totalorder %s199, %s202
    %p208 = scmp.eq.s32.totalorder %s13, 0
    %p209 = por %p207, %p208
    %p210 = scmp.ne.s32.totalorder %s199, %s202
    %p211 = scmp.eq.s32.totalorder %s18, 1
    %p212 = por %p210, %p211
    %p213 = scmp.ne.s32.totalorder %s202, %s203
    %p214 = scmp.eq.s32.totalorder %s18, 0
    %p215 = por %p213, %p214
    %p216 = scmp.ne.s32.totalorder %s202, %s203
    %p217 = scmp.eq.s32.totalorder %s19, 1
    %p218 = por %p216, %p217
    %p220 = scmp.ne.s32.totalorder %s203, %s219
    %p221 = scmp.eq.s32.totalorder %s19, 0
    %p222 = por %p220, %p221
    %p223 = scmp.le.s32.totalorder 1, %s13
    %p224 = scmp.lt.s32.totalorder %s13, 3
    %p225 = pnand %p223, %p224
    %p226 = pneg %p225
    // Predicated region
    $region9: #{tpu_custom_call.1} parent=5 // pred_check
      _
    $region10: #{tpu_custom_call.1} parent=5 // pred_check_branch
      %228 = sbr.rel (%p225) target = $region12
    $region11: #{tpu_custom_call.1} parent=5 // pred_region
      %s229 = ssub.s32 %s13, 1
    $region12: #{tpu_custom_call.1} parent=5 // pred_fallthru
      _
    %p230 = scmp.lt.s32.totalorder %s13, 2
    // Predicated region
    $region13: #{tpu_custom_call.1} parent=5 // pred_check
      %p231 = pneg %p230
    $region14: #{tpu_custom_call.1} parent=5 // pred_check_branch
      %233 = sbr.rel (%p231) target = $region16
    $region15: #{tpu_custom_call.1} parent=5 // pred_region
      // Predicated region
      $region17: #{tpu_custom_call.1} parent=15 // pred_check
        %p234 = pneg %p47
      $region18: #{tpu_custom_call.1} parent=15 // pred_check_branch
        %236 = sbr.rel (%p234) target = $region20
      $region19: #{tpu_custom_call.1} parent=15 // pred_region
        %s237 = smul.u32 13, %s21
        %p238 = scmp.lt.s32.totalorder %s20, 1
        %s239 = scalar_select %p238, %s20, 1
        %p240 = scmp.lt.s32.totalorder %s237, 12
        %s241 = scalar_select %p240, %s237, 12
        %s242 = smul.addr %s239, 13
        %s243 = sadd.s32 %s241, %s242
        %s244 = smul.addr %s243, 8
        %s245 = scalar_lea.vmem %s0, %s244
        %s246 = smul.u32 13, %s21
      $region20: #{tpu_custom_call.1} parent=15 // pred_fallthru
        _
      // Predicated region
      $region21: #{tpu_custom_call.1} parent=15 // pred_check
        %p247 = pneg %p73
      $region22: #{tpu_custom_call.1} parent=15 // pred_check_branch
        %249 = sbr.rel (%p247) target = $region24
      $region23: #{tpu_custom_call.1} parent=15 // pred_region
        %p250 = scmp.lt.s32.totalorder %s20, 1
        %s251 = scalar_select %p250, %s20, 1
        %s252 = smul.addr %s251, 8
        %s253 = scalar_lea.vmem %s1, %s252
      $region24: #{tpu_custom_call.1} parent=15 // pred_fallthru
        _
      // Predicated region
      $region25: #{tpu_custom_call.1} parent=15 // pred_check
        %p254 = pneg %p99
      $region26: #{tpu_custom_call.1} parent=15 // pred_check_branch
        %256 = sbr.rel (%p254) target = $region28
      $region27: #{tpu_custom_call.1} parent=15 // pred_region
        %p257 = scmp.lt.s32.totalorder %s20, 1
        %s258 = scalar_select %p257, %s20, 1
        %s259 = smul.addr %s258, 16
        %s260 = smul.addr %s259, 8
        %s261 = scalar_lea.vmem %s2, %s260
      $region28: #{tpu_custom_call.1} parent=15 // pred_fallthru
        _
      // Predicated region
      $region29: #{tpu_custom_call.1} parent=15 // pred_check
        %p262 = pneg %p125
      $region30: #{tpu_custom_call.1} parent=15 // pred_check_branch
        %264 = sbr.rel (%p262) target = $region32
      $region31: #{tpu_custom_call.1} parent=15 // pred_region
        %p265 = scmp.lt.s32.totalorder %s20, 1
        %s266 = scalar_select %p265, %s20, 1
        %s267 = scalar_lea.vmem %s3, %s266
      $region32: #{tpu_custom_call.1} parent=15 // pred_fallthru
        _
    $region16: #{tpu_custom_call.1} parent=5 // pred_fallthru
      _
    %p268 = scmp.le.s32.totalorder 1, %s13
    %p269 = scmp.lt.s32.totalorder %s13, 3
    %p270 = pnand %p268, %p269
    %p271 = pneg %p270
    // Predicated region
    $region33: #{tpu_custom_call.1} parent=5 // pred_check
      _
    $region34: #{tpu_custom_call.1} parent=5 // pred_check_branch
      %273 = sbr.rel (%p270) target = $region36
    $region35: #{tpu_custom_call.1} parent=5 // pred_region
      %s274 = ssub.s32 %s13, 1
      %s275 = smul.u32 13, %s23
      %p276 = scmp.lt.s32.totalorder %s22, 1
      %s277 = scalar_select %p276, %s22, 1
      %p278 = scmp.lt.s32.totalorder %s275, 12
      %s279 = scalar_select %p278, %s275, 12
      %s280 = smul.addr %s277, 13
      %s281 = sadd.s32 %s279, %s280
      %s282 = smul.addr %s281, 8
      %s283 = scalar_lea.vmem %s0, %s282
      %p284 = pneg %p53
      %p285 = pneg %p50
      %p286 = scmp.lt.s32.totalorder %s22, 1
      %s287 = scalar_select %p286, %s22, 1
      %s288 = smul.addr %s287, 8
      %s289 = scalar_lea.vmem %s1, %s288
      %p290 = pneg %p79
      %p291 = pneg %p76
      %p292 = scmp.lt.s32.totalorder %s22, 1
      %s293 = scalar_select %p292, %s22, 1
      %s294 = smul.addr %s293, 16
      %s295 = smul.addr %s294, 8
      %s296 = scalar_lea.vmem %s2, %s295
      %p297 = pneg %p105
      %p298 = pneg %p102
      %p299 = scmp.lt.s32.totalorder %s22, 1
      %s300 = scalar_select %p299, %s22, 1
      %s301 = scalar_lea.vmem %s3, %s300
      %p302 = pneg %p131
      %p303 = pneg %p128
      %p304 = pneg %p159
      %p305 = pneg %p156
      %s306 = smul.u32 13, %s23
      %p307 = scmp.lt.s32.totalorder %s22, 1
      %s308 = scalar_select %p307, %s22, 1
      %p309 = scmp.lt.s32.totalorder %s306, 12
      %s310 = scalar_select %p309, %s306, 12
      %s311 = smul.addr %s308, 13
      %s312 = sadd.s32 %s310, %s311
      %s313 = smul.addr %s312, 8
      %s314 = scalar_lea.vmem %s4, %s313
      %p315 = pneg %p187
      %p316 = pneg %p184
      %s317 = smul.u32 13, %s23
      %p318 = scmp.lt.s32.totalorder %s22, 1
      %s319 = scalar_select %p318, %s22, 1
      %p320 = scmp.lt.s32.totalorder %s317, 12
      %s321 = scalar_select %p320, %s317, 12
      %s322 = smul.addr %s319, 13
      %s323 = sadd.s32 %s321, %s322
      %s324 = smul.addr %s323, 8
      %s325 = scalar_lea.vmem %s5, %s324
      %p326 = pneg %p215
      %p327 = pneg %p212
      %s328 = smul.u32 13, %s23
      %p329 = scmp.lt.s32.totalorder %s22, 1
      %s330 = scalar_select %p329, %s22, 1
      %p331 = scmp.lt.s32.totalorder %s328, 12
      %s332 = scalar_select %p331, %s328, 12
      %s333 = smul.addr %s330, 13
      %s334 = sadd.s32 %s332, %s333
      %s335 = smul.addr %s334, 8
      %s336 = scalar_lea.vmem %s6, %s335
      %s337 = smul.u32 13, %s23
      %p338 = scmp.lt.s32.totalorder %s22, 1
      %s339 = scalar_select %p338, %s22, 1
      %p340 = scmp.lt.s32.totalorder %s337, 12
      %s341 = scalar_select %p340, %s337, 12
      %s342 = smul.addr %s339, 13
      %s343 = sadd.s32 %s341, %s342
      %s344 = smul.addr %s343, 8
      %s345 = scalar_lea.vmem %s0, %s344
      %s346 = smul.u32 13, %s23
      %p347 = scmp.lt.s32.totalorder %s22, 1
      %s348 = scalar_select %p347, %s22, 1
      %s349 = smul.addr %s348, 8
      %s350 = scalar_lea.vmem %s1, %s349
      %p351 = scmp.lt.s32.totalorder %s22, 1
      %s352 = scalar_select %p351, %s22, 1
      %s353 = smul.addr %s352, 16
      %s354 = smul.addr %s353, 8
      %s355 = scalar_lea.vmem %s2, %s354
      %p356 = scmp.lt.s32.totalorder %s22, 1
      %s357 = scalar_select %p356, %s22, 1
      %s358 = scalar_lea.vmem %s3, %s357
      %s359 = smul.u32 13, %s23
      %p360 = scmp.lt.s32.totalorder %s22, 1
      %s361 = scalar_select %p360, %s22, 1
      %p362 = scmp.lt.s32.totalorder %s359, 12
      %s363 = scalar_select %p362, %s359, 12
      %s364 = smul.addr %s361, 13
      %s365 = sadd.s32 %s363, %s364
      %s366 = smul.addr %s365, 8
      %s367 = scalar_lea.vmem %s4, %s366
      %s368 = smul.u32 13, %s23
      %s369 = smul.u32 13, %s23
      %p370 = scmp.lt.s32.totalorder %s22, 1
      %s371 = scalar_select %p370, %s22, 1
      %p372 = scmp.lt.s32.totalorder %s369, 12
      %s373 = scalar_select %p372, %s369, 12
      %s374 = smul.addr %s371, 13
      %s375 = sadd.s32 %s373, %s374
      %s376 = smul.addr %s375, 8
      %s377 = scalar_lea.vmem %s5, %s376
      %s378 = smul.u32 13, %s23
      %s379 = smul.u32 13, %s23
      %p380 = scmp.lt.s32.totalorder %s22, 1
      %s381 = scalar_select %p380, %s22, 1
      %p382 = scmp.lt.s32.totalorder %s379, 12
      %s383 = scalar_select %p382, %s379, 12
      %s384 = smul.addr %s381, 13
      %s385 = sadd.s32 %s383, %s384
      %s386 = smul.addr %s385, 8
      %s387 = scalar_lea.vmem %s6, %s386
      %s388 = smul.u32 13, %s23
      %v389 = vld [vmem:[%s345] sm:$0xff]
      %v390 = vld [vmem:[%s345 + $0x8] sm:$0xff]
      %v391 = vld [vmem:[%s345 + $0x10] sm:$0xff]
      %v392 = vld [vmem:[%s345 + $0x18] sm:$0xff]
      %v393 = vld [vmem:[%s345 + $0x20] sm:$0xff]
      %v394 = vld [vmem:[%s345 + $0x28] sm:$0xff]
      %v395 = vld [vmem:[%s345 + $0x30] sm:$0xff]
      %v396 = vld [vmem:[%s345 + $0x38] sm:$0xff]
      %v397 = vld [vmem:[%s345 + $0x40] sm:$0xff]
      %v398 = vld [vmem:[%s345 + $0x48] sm:$0xff]
      %v399 = vld [vmem:[%s345 + $0x50] sm:$0xff]
      %v400 = vld [vmem:[%s345 + $0x58] sm:$0xff]
      %v401 = vld [vmem:[%s345 + $0x60] sm:$0xf]
      %v402 = vld [vmem:[%s350] sm:$0xff]
      %v403 = vld [vmem:[%s355] sm:$0xff]
      %v404 = vld [vmem:[%s355 + $0x8] sm:$0xff]
      %v405 = vld [vmem:[%s355 + $0x10] sm:$0xff]
      %v406 = vld [vmem:[%s355 + $0x18] sm:$0xff]
      %v407 = vld [vmem:[%s355 + $0x20] sm:$0xff]
      %v408 = vld [vmem:[%s355 + $0x28] sm:$0xff]
      %v409 = vld [vmem:[%s355 + $0x30] sm:$0xff]
      %v410 = vld [vmem:[%s355 + $0x38] sm:$0xff]
      %v411 = vld [vmem:[%s355 + $0x40] sm:$0xff]
      %v412 = vld [vmem:[%s355 + $0x48] sm:$0xff]
      %v413 = vld [vmem:[%s355 + $0x50] sm:$0xff]
      %v414 = vld [vmem:[%s355 + $0x58] sm:$0xff]
      %v415 = vld [vmem:[%s355 + $0x60] sm:$0xff]
      %v416 = vld [vmem:[%s355 + $0x68] sm:$0xff]
      %v417 = vld [vmem:[%s355 + $0x70] sm:$0xff]
      %v418 = vld [vmem:[%s355 + $0x78] sm:$0xff]
      %v419 = vld [vmem:[%s358] sm:$0x1]
      %v420 = vmul.f32 %v389, %v389
      %v421 = vmul.f32 %v390, %v390
      %v422 = vmul.f32 %v391, %v391
      %v423 = vmul.f32 %v392, %v392
      %v424 = vmul.f32 %v393, %v393
      %v425 = vmul.f32 %v394, %v394
      %v426 = vmul.f32 %v395, %v395
      %v427 = vmul.f32 %v396, %v396
      %v428 = vmul.f32 %v397, %v397
      %v429 = vmul.f32 %v398, %v398
      %v430 = vmul.f32 %v399, %v399
      %v431 = vmul.f32 %v400, %v400
      %v432 = vmul.f32 %v401, %v401
      %vm433 = vcmask 64512
      %v434 = vsel %vm433, %v420, 0.0
      %435 = vadd.xlane.f32.xlu0 %v434
      %v436 = vpop.xlane.xlu0 %435
      %v437 = vsel %vm433, %v421, 0.0
      %438 = vadd.xlane.f32.xlu0 %v437
      %v439 = vpop.xlane.xlu0 %438
      %v440 = vsel %vm433, %v422, 0.0
      %441 = vadd.xlane.f32.xlu0 %v440
      %v442 = vpop.xlane.xlu0 %441
      %v443 = vsel %vm433, %v423, 0.0
      %444 = vadd.xlane.f32.xlu0 %v443
      %v445 = vpop.xlane.xlu0 %444
      %v446 = vsel %vm433, %v424, 0.0
      %447 = vadd.xlane.f32.xlu0 %v446
      %v448 = vpop.xlane.xlu0 %447
      %v449 = vsel %vm433, %v425, 0.0
      %450 = vadd.xlane.f32.xlu0 %v449
      %v451 = vpop.xlane.xlu0 %450
      %v452 = vsel %vm433, %v426, 0.0
      %453 = vadd.xlane.f32.xlu0 %v452
      %v454 = vpop.xlane.xlu0 %453
      %v455 = vsel %vm433, %v427, 0.0
      %456 = vadd.xlane.f32.xlu0 %v455
      %v457 = vpop.xlane.xlu0 %456
      %v458 = vsel %vm433, %v428, 0.0
      %459 = vadd.xlane.f32.xlu0 %v458
      %v460 = vpop.xlane.xlu0 %459
      %v461 = vsel %vm433, %v429, 0.0
      %462 = vadd.xlane.f32.xlu0 %v461
      %v463 = vpop.xlane.xlu0 %462
      %v464 = vsel %vm433, %v430, 0.0
      %465 = vadd.xlane.f32.xlu0 %v464
      %v466 = vpop.xlane.xlu0 %465
      %v467 = vsel %vm433, %v431, 0.0
      %468 = vadd.xlane.f32.xlu0 %v467
      %v469 = vpop.xlane.xlu0 %468
      %vm470 = vcmask 60416
      %v471 = vsel %vm470, %v432, 0.0
      %472 = vadd.xlane.f32.xlu0 %v471
      %v473 = vpop.xlane.xlu0 %472
      %v474 = vmul.f32 %v436, 0.125
      %v475 = vmul.f32 %v439, 0.125
      %v476 = vmul.f32 %v442, 0.125
      %v477 = vmul.f32 %v445, 0.125
      %v478 = vmul.f32 %v448, 0.125
      %v479 = vmul.f32 %v451, 0.125
      %v480 = vmul.f32 %v454, 0.125
      %v481 = vmul.f32 %v457, 0.125
      %v482 = vmul.f32 %v460, 0.125
      %v483 = vmul.f32 %v463, 0.125
      %v484 = vmul.f32 %v466, 0.125
      %v485 = vmul.f32 %v469, 0.125
      %v486 = vmul.f32 %v473, 0.125
      %v488 = vsel %vm433, %v389, 0
      %v491 = vsel %vm433, %v390, 0
      %v494 = vsel %vm433, %v391, 0
      %v497 = vsel %vm433, %v392, 0
      %v500 = vsel %vm433, %v393, 0
      %v503 = vsel %vm433, %v394, 0
      %v506 = vsel %vm433, %v395, 0
      %v509 = vsel %vm433, %v396, 0
      %v512 = vsel %vm433, %v397, 0
      %v515 = vsel %vm433, %v398, 0
      %v518 = vsel %vm433, %v399, 0
      %v521 = vsel %vm433, %v400, 0
      %v524 = vsel %vm433, %v401, 0
      %526 = vmatpush.msra.mxu0 0.0
      %527 = vmatpush.msra.mxu0 0.0
      %528 = vmatpush.msra.mxu0 0.0
      %529 = vmatpush.msra.mxu0 0.0
      %530 = vmatpush.msra.mxu0 0.0
      %531 = vmatpush.msra.mxu0 0.0
      %532 = vmatpush.msra.mxu0 0.0
      %533 = vmatpush.msra.mxu0 0.0
      %534 = vmatpush.msra.mxu0 0.0
      %535 = vmatpush.msra.mxu0 0.0
      %536 = vmatpush.msra.mxu0 0.0
      %537 = vmatpush.msra.mxu0 0.0
      %538 = vmatpush.msra.mxu0 0.0
      %539 = vmatpush.msra.mxu0 0.0
      %540 = vmatpush.msra.mxu0 0.0
      %v541 = vand.u32 %v402, 4294901760
      %542 = vmatpush.msra.mxu0 %v541
      %v543 = vand.u32 %v488, 4294901760
      %v544 = vsub.f32 %v488, %v543
      %v545 = vand.u32 %v544, 4294901760
      %v546 = vsub.f32 %v544, %v545
      %v547 = vand.u32 %v546, 4294901760
      %548 = vmatmul.f32.gmra.mxu0 %v547
      %v549 = vpop.f32.mrf.mxu0
      %v550 = vadd.f32 0.0, %v549
      %v551 = vand.u32 %v491, 4294901760
      %v552 = vsub.f32 %v491, %v551
      %v553 = vand.u32 %v552, 4294901760
      %v554 = vsub.f32 %v552, %v553
      %v555 = vand.u32 %v554, 4294901760
      %556 = vmatmul.f32.gmra.mxu0 %v555
      %v557 = vpop.f32.mrf.mxu0
      %v558 = vadd.f32 0.0, %v557
      %v559 = vand.u32 %v494, 4294901760
      %v560 = vsub.f32 %v494, %v559
      %v561 = vand.u32 %v560, 4294901760
      %v562 = vsub.f32 %v560, %v561
      %v563 = vand.u32 %v562, 4294901760
      %564 = vmatmul.f32.gmra.mxu0 %v563
      %v565 = vpop.f32.mrf.mxu0
      %v566 = vadd.f32 0.0, %v565
      %v567 = vand.u32 %v497, 4294901760
      %v568 = vsub.f32 %v497, %v567
      %v569 = vand.u32 %v568, 4294901760
      %v570 = vsub.f32 %v568, %v569
      %v571 = vand.u32 %v570, 4294901760
      %572 = vmatmul.f32.gmra.mxu0 %v571
      %v573 = vpop.f32.mrf.mxu0
      %v574 = vadd.f32 0.0, %v573
      %v575 = vand.u32 %v500, 4294901760
      %v576 = vsub.f32 %v500, %v575
      %v577 = vand.u32 %v576, 4294901760
      %v578 = vsub.f32 %v576, %v577
      %v579 = vand.u32 %v578, 4294901760
      %580 = vmatmul.f32.gmra.mxu0 %v579
      %v581 = vpop.f32.mrf.mxu0
      %v582 = vadd.f32 0.0, %v581
      %v583 = vand.u32 %v503, 4294901760
      %v584 = vsub.f32 %v503, %v583
      %v585 = vand.u32 %v584, 4294901760
      %v586 = vsub.f32 %v584, %v585
      %v587 = vand.u32 %v586, 4294901760
      %588 = vmatmul.f32.gmra.mxu0 %v587
      %v589 = vpop.f32.mrf.mxu0
      %v590 = vadd.f32 0.0, %v589
      %v591 = vand.u32 %v506, 4294901760
      %v592 = vsub.f32 %v506, %v591
      %v593 = vand.u32 %v592, 4294901760
      %v594 = vsub.f32 %v592, %v593
      %v595 = vand.u32 %v594, 4294901760
      %596 = vmatmul.f32.gmra.mxu0 %v595
      %v597 = vpop.f32.mrf.mxu0
      %v598 = vadd.f32 0.0, %v597
      %v599 = vand.u32 %v509, 4294901760
      %v600 = vsub.f32 %v509, %v599
      %v601 = vand.u32 %v600, 4294901760
      %v602 = vsub.f32 %v600, %v601
      %v603 = vand.u32 %v602, 4294901760
      %604 = vmatmul.f32.gmra.mxu0 %v603
      %v605 = vpop.f32.mrf.mxu0
      %v606 = vadd.f32 0.0, %v605
      %v607 = vand.u32 %v512, 4294901760
      %v608 = vsub.f32 %v512, %v607
      %v609 = vand.u32 %v608, 4294901760
      %v610 = vsub.f32 %v608, %v609
      %v611 = vand.u32 %v610, 4294901760
      %612 = vmatmul.f32.gmra.mxu0 %v611
      %v613 = vpop.f32.mrf.mxu0
      %v614 = vadd.f32 0.0, %v613
      %v615 = vand.u32 %v515, 4294901760
      %v616 = vsub.f32 %v515, %v615
      %v617 = vand.u32 %v616, 4294901760
      %v618 = vsub.f32 %v616, %v617
      %v619 = vand.u32 %v618, 4294901760
      %620 = vmatmul.f32.gmra.mxu0 %v619
      %v621 = vpop.f32.mrf.mxu0
      %v622 = vadd.f32 0.0, %v621
      %v623 = vand.u32 %v518, 4294901760
      %v624 = vsub.f32 %v518, %v623
      %v625 = vand.u32 %v624, 4294901760
      %v626 = vsub.f32 %v624, %v625
      %v627 = vand.u32 %v626, 4294901760
      %628 = vmatmul.f32.gmra.mxu0 %v627
      %v629 = vpop.f32.mrf.mxu0
      %v630 = vadd.f32 0.0, %v629
      %v631 = vand.u32 %v521, 4294901760
      %v632 = vsub.f32 %v521, %v631
      %v633 = vand.u32 %v632, 4294901760
      %v634 = vsub.f32 %v632, %v633
      %v635 = vand.u32 %v634, 4294901760
      %636 = vmatmul.f32.gmra.mxu0 %v635
      %v637 = vpop.f32.mrf.mxu0
      %v638 = vadd.f32 0.0, %v637
      %v639 = vand.u32 %v524, 4294901760
      %v640 = vsub.f32 %v524, %v639
      %v641 = vand.u32 %v640, 4294901760
      %v642 = vsub.f32 %v640, %v641
      %v643 = vand.u32 %v642, 4294901760
      %644 = vmatmul.f32.gmra.mxu0 %v643
      %v645 = vpop.f32.mrf.mxu0
      %v646 = vadd.f32 0.0, %v645
      %647 = vdwg.mxu0
      %648 = vmatpush.msra.mxu0 0.0
      %649 = vmatpush.msra.mxu0 0.0
      %650 = vmatpush.msra.mxu0 0.0
      %651 = vmatpush.msra.mxu0 0.0
      %652 = vmatpush.msra.mxu0 0.0
      %653 = vmatpush.msra.mxu0 0.0
      %654 = vmatpush.msra.mxu0 0.0
      %655 = vmatpush.msra.mxu0 0.0
      %656 = vmatpush.msra.mxu0 0.0
      %657 = vmatpush.msra.mxu0 0.0
      %658 = vmatpush.msra.mxu0 0.0
      %659 = vmatpush.msra.mxu0 0.0
      %660 = vmatpush.msra.mxu0 0.0
      %661 = vmatpush.msra.mxu0 0.0
      %662 = vmatpush.msra.mxu0 0.0
      %v663 = vand.u32 %v402, 4294901760
      %v664 = vsub.f32 %v402, %v663
      %v665 = vand.u32 %v664, 4294901760
      %v666 = vsub.f32 %v664, %v665
      %v667 = vand.u32 %v666, 4294901760
      %668 = vmatpush.msra.mxu0 %v667
      %v669 = vand.u32 %v488, 4294901760
      %670 = vmatmul.f32.gmra.mxu0 %v669
      %v671 = vpop.f32.mrf.mxu0
      %v672 = vadd.f32 %v550, %v671
      %v673 = vand.u32 %v491, 4294901760
      %674 = vmatmul.f32.gmra.mxu0 %v673
      %v675 = vpop.f32.mrf.mxu0
      %v676 = vadd.f32 %v558, %v675
      %v677 = vand.u32 %v494, 4294901760
      %678 = vmatmul.f32.gmra.mxu0 %v677
      %v679 = vpop.f32.mrf.mxu0
      %v680 = vadd.f32 %v566, %v679
      %v681 = vand.u32 %v497, 4294901760
      %682 = vmatmul.f32.gmra.mxu0 %v681
      %v683 = vpop.f32.mrf.mxu0
      %v684 = vadd.f32 %v574, %v683
      %v685 = vand.u32 %v500, 4294901760
      %686 = vmatmul.f32.gmra.mxu0 %v685
      %v687 = vpop.f32.mrf.mxu0
      %v688 = vadd.f32 %v582, %v687
      %v689 = vand.u32 %v503, 4294901760
      %690 = vmatmul.f32.gmra.mxu0 %v689
      %v691 = vpop.f32.mrf.mxu0
      %v692 = vadd.f32 %v590, %v691
      %v693 = vand.u32 %v506, 4294901760
      %694 = vmatmul.f32.gmra.mxu0 %v693
      %v695 = vpop.f32.mrf.mxu0
      %v696 = vadd.f32 %v598, %v695
      %v697 = vand.u32 %v509, 4294901760
      %698 = vmatmul.f32.gmra.mxu0 %v697
      %v699 = vpop.f32.mrf.mxu0
      %v700 = vadd.f32 %v606, %v699
      %v701 = vand.u32 %v512, 4294901760
      %702 = vmatmul.f32.gmra.mxu0 %v701
      %v703 = vpop.f32.mrf.mxu0
      %v704 = vadd.f32 %v614, %v703
      %v705 = vand.u32 %v515, 4294901760
      %706 = vmatmul.f32.gmra.mxu0 %v705
      %v707 = vpop.f32.mrf.mxu0
      %v708 = vadd.f32 %v622, %v707
      %v709 = vand.u32 %v518, 4294901760
      %710 = vmatmul.f32.gmra.mxu0 %v709
      %v711 = vpop.f32.mrf.mxu0
      %v712 = vadd.f32 %v630, %v711
      %v713 = vand.u32 %v521, 4294901760
      %714 = vmatmul.f32.gmra.mxu0 %v713
      %v715 = vpop.f32.mrf.mxu0
      %v716 = vadd.f32 %v638, %v715
      %v717 = vand.u32 %v524, 4294901760
      %718 = vmatmul.f32.gmra.mxu0 %v717
      %v719 = vpop.f32.mrf.mxu0
      %v720 = vadd.f32 %v646, %v719
      %721 = vdwg.mxu0
      %722 = vmatpush.msra.mxu0 0.0
      %723 = vmatpush.msra.mxu0 0.0
      %724 = vmatpush.msra.mxu0 0.0
      %725 = vmatpush.msra.mxu0 0.0
      %726 = vmatpush.msra.mxu0 0.0
      %727 = vmatpush.msra.mxu0 0.0
      %728 = vmatpush.msra.mxu0 0.0
      %729 = vmatpush.msra.mxu0 0.0
      %730 = vmatpush.msra.mxu0 0.0
      %731 = vmatpush.msra.mxu0 0.0
      %732 = vmatpush.msra.mxu0 0.0
      %733 = vmatpush.msra.mxu0 0.0
      %734 = vmatpush.msra.mxu0 0.0
      %735 = vmatpush.msra.mxu0 0.0
      %736 = vmatpush.msra.mxu0 0.0
      %v737 = vand.u32 %v402, 4294901760
      %v738 = vsub.f32 %v402, %v737
      %739 = vmatpush.msra.mxu0 %v738
      %v740 = vand.u32 %v488, 4294901760
      %v741 = vsub.f32 %v488, %v740
      %742 = vmatmul.f32.gmra.mxu0 %v741
      %v743 = vpop.f32.mrf.mxu0
      %v744 = vadd.f32 %v672, %v743
      %v745 = vand.u32 %v491, 4294901760
      %v746 = vsub.f32 %v491, %v745
      %747 = vmatmul.f32.gmra.mxu0 %v746
      %v748 = vpop.f32.mrf.mxu0
      %v749 = vadd.f32 %v676, %v748
      %v750 = vand.u32 %v494, 4294901760
      %v751 = vsub.f32 %v494, %v750
      %752 = vmatmul.f32.gmra.mxu0 %v751
      %v753 = vpop.f32.mrf.mxu0
      %v754 = vadd.f32 %v680, %v753
      %v755 = vand.u32 %v497, 4294901760
      %v756 = vsub.f32 %v497, %v755
      %757 = vmatmul.f32.gmra.mxu0 %v756
      %v758 = vpop.f32.mrf.mxu0
      %v759 = vadd.f32 %v684, %v758
      %v760 = vand.u32 %v500, 4294901760
      %v761 = vsub.f32 %v500, %v760
      %762 = vmatmul.f32.gmra.mxu0 %v761
      %v763 = vpop.f32.mrf.mxu0
      %v764 = vadd.f32 %v688, %v763
      %v765 = vand.u32 %v503, 4294901760
      %v766 = vsub.f32 %v503, %v765
      %767 = vmatmul.f32.gmra.mxu0 %v766
      %v768 = vpop.f32.mrf.mxu0
      %v769 = vadd.f32 %v692, %v768
      %v770 = vand.u32 %v506, 4294901760
      %v771 = vsub.f32 %v506, %v770
      %772 = vmatmul.f32.gmra.mxu0 %v771
      %v773 = vpop.f32.mrf.mxu0
      %v774 = vadd.f32 %v696, %v773
      %v775 = vand.u32 %v509, 4294901760
      %v776 = vsub.f32 %v509, %v775
      %777 = vmatmul.f32.gmra.mxu0 %v776
      %v778 = vpop.f32.mrf.mxu0
      %v779 = vadd.f32 %v700, %v778
      %v780 = vand.u32 %v512, 4294901760
      %v781 = vsub.f32 %v512, %v780
      %782 = vmatmul.f32.gmra.mxu0 %v781
      %v783 = vpop.f32.mrf.mxu0
      %v784 = vadd.f32 %v704, %v783
      %v785 = vand.u32 %v515, 4294901760
      %v786 = vsub.f32 %v515, %v785
      %787 = vmatmul.f32.gmra.mxu0 %v786
      %v788 = vpop.f32.mrf.mxu0
      %v789 = vadd.f32 %v708, %v788
      %v790 = vand.u32 %v518, 4294901760
      %v791 = vsub.f32 %v518, %v790
      %792 = vmatmul.f32.gmra.mxu0 %v791
      %v793 = vpop.f32.mrf.mxu0
      %v794 = vadd.f32 %v712, %v793
      %v795 = vand.u32 %v521, 4294901760
      %v796 = vsub.f32 %v521, %v795
      %797 = vmatmul.f32.gmra.mxu0 %v796
      %v798 = vpop.f32.mrf.mxu0
      %v799 = vadd.f32 %v716, %v798
      %v800 = vand.u32 %v524, 4294901760
      %v801 = vsub.f32 %v524, %v800
      %802 = vmatmul.f32.gmra.mxu0 %v801
      %v803 = vpop.f32.mrf.mxu0
      %v804 = vadd.f32 %v720, %v803
      %805 = vdwg.mxu0
      %806 = vmatpush.msra.mxu0 0.0
      %807 = vmatpush.msra.mxu0 0.0
      %808 = vmatpush.msra.mxu0 0.0
      %809 = vmatpush.msra.mxu0 0.0
      %810 = vmatpush.msra.mxu0 0.0
      %811 = vmatpush.msra.mxu0 0.0
      %812 = vmatpush.msra.mxu0 0.0
      %813 = vmatpush.msra.mxu0 0.0
      %814 = vmatpush.msra.mxu0 0.0
      %815 = vmatpush.msra.mxu0 0.0
      %816 = vmatpush.msra.mxu0 0.0
      %817 = vmatpush.msra.mxu0 0.0
      %818 = vmatpush.msra.mxu0 0.0
      %819 = vmatpush.msra.mxu0 0.0
      %820 = vmatpush.msra.mxu0 0.0
      %v821 = vand.u32 %v402, 4294901760
      %822 = vmatpush.msra.mxu0 %v821
      %v823 = vand.u32 %v488, 4294901760
      %v824 = vsub.f32 %v488, %v823
      %v825 = vand.u32 %v824, 4294901760
      %826 = vmatmul.f32.gmra.mxu0 %v825
      %v827 = vpop.f32.mrf.mxu0
      %v828 = vadd.f32 %v744, %v827
      %v829 = vand.u32 %v491, 4294901760
      %v830 = vsub.f32 %v491, %v829
      %v831 = vand.u32 %v830, 4294901760
      %832 = vmatmul.f32.gmra.mxu0 %v831
      %v833 = vpop.f32.mrf.mxu0
      %v834 = vadd.f32 %v749, %v833
      %v835 = vand.u32 %v494, 4294901760
      %v836 = vsub.f32 %v494, %v835
      %v837 = vand.u32 %v836, 4294901760
      %838 = vmatmul.f32.gmra.mxu0 %v837
      %v839 = vpop.f32.mrf.mxu0
      %v840 = vadd.f32 %v754, %v839
      %v841 = vand.u32 %v497, 4294901760
      %v842 = vsub.f32 %v497, %v841
      %v843 = vand.u32 %v842, 4294901760
      %844 = vmatmul.f32.gmra.mxu0 %v843
      %v845 = vpop.f32.mrf.mxu0
      %v846 = vadd.f32 %v759, %v845
      %v847 = vand.u32 %v500, 4294901760
      %v848 = vsub.f32 %v500, %v847
      %v849 = vand.u32 %v848, 4294901760
      %850 = vmatmul.f32.gmra.mxu0 %v849
      %v851 = vpop.f32.mrf.mxu0
      %v852 = vadd.f32 %v764, %v851
      %v853 = vand.u32 %v503, 4294901760
      %v854 = vsub.f32 %v503, %v853
      %v855 = vand.u32 %v854, 4294901760
      %856 = vmatmul.f32.gmra.mxu0 %v855
      %v857 = vpop.f32.mrf.mxu0
      %v858 = vadd.f32 %v769, %v857
      %v859 = vand.u32 %v506, 4294901760
      %v860 = vsub.f32 %v506, %v859
      %v861 = vand.u32 %v860, 4294901760
      %862 = vmatmul.f32.gmra.mxu0 %v861
      %v863 = vpop.f32.mrf.mxu0
      %v864 = vadd.f32 %v774, %v863
      %v865 = vand.u32 %v509, 4294901760
      %v866 = vsub.f32 %v509, %v865
      %v867 = vand.u32 %v866, 4294901760
      %868 = vmatmul.f32.gmra.mxu0 %v867
      %v869 = vpop.f32.mrf.mxu0
      %v870 = vadd.f32 %v779, %v869
      %v871 = vand.u32 %v512, 4294901760
      %v872 = vsub.f32 %v512, %v871
      %v873 = vand.u32 %v872, 4294901760
      %874 = vmatmul.f32.gmra.mxu0 %v873
      %v875 = vpop.f32.mrf.mxu0
      %v876 = vadd.f32 %v784, %v875
      %v877 = vand.u32 %v515, 4294901760
      %v878 = vsub.f32 %v515, %v877
      %v879 = vand.u32 %v878, 4294901760
      %880 = vmatmul.f32.gmra.mxu0 %v879
      %v881 = vpop.f32.mrf.mxu0
      %v882 = vadd.f32 %v789, %v881
      %v883 = vand.u32 %v518, 4294901760
      %v884 = vsub.f32 %v518, %v883
      %v885 = vand.u32 %v884, 4294901760
      %886 = vmatmul.f32.gmra.mxu0 %v885
      %v887 = vpop.f32.mrf.mxu0
      %v888 = vadd.f32 %v794, %v887
      %v889 = vand.u32 %v521, 4294901760
      %v890 = vsub.f32 %v521, %v889
      %v891 = vand.u32 %v890, 4294901760
      %892 = vmatmul.f32.gmra.mxu0 %v891
      %v893 = vpop.f32.mrf.mxu0
      %v894 = vadd.f32 %v799, %v893
      %v895 = vand.u32 %v524, 4294901760
      %v896 = vsub.f32 %v524, %v895
      %v897 = vand.u32 %v896, 4294901760
      %898 = vmatmul.f32.gmra.mxu0 %v897
      %v899 = vpop.f32.mrf.mxu0
      %v900 = vadd.f32 %v804, %v899
      %901 = vdwg.mxu0
      %902 = vmatpush.msra.mxu0 0.0
      %903 = vmatpush.msra.mxu0 0.0
      %904 = vmatpush.msra.mxu0 0.0
      %905 = vmatpush.msra.mxu0 0.0
      %906 = vmatpush.msra.mxu0 0.0
      %907 = vmatpush.msra.mxu0 0.0
      %908 = vmatpush.msra.mxu0 0.0
      %909 = vmatpush.msra.mxu0 0.0
      %910 = vmatpush.msra.mxu0 0.0
      %911 = vmatpush.msra.mxu0 0.0
      %912 = vmatpush.msra.mxu0 0.0
      %913 = vmatpush.msra.mxu0 0.0
      %914 = vmatpush.msra.mxu0 0.0
      %915 = vmatpush.msra.mxu0 0.0
      %916 = vmatpush.msra.mxu0 0.0
      %v917 = vand.u32 %v402, 4294901760
      %v918 = vsub.f32 %v402, %v917
      %v919 = vand.u32 %v918, 4294901760
      %920 = vmatpush.msra.mxu0 %v919
      %v921 = vand.u32 %v488, 4294901760
      %922 = vmatmul.f32.gmra.mxu0 %v921
      %v923 = vpop.f32.mrf.mxu0
      %v924 = vadd.f32 %v828, %v923
      %v925 = vand.u32 %v491, 4294901760
      %926 = vmatmul.f32.gmra.mxu0 %v925
      %v927 = vpop.f32.mrf.mxu0
      %v928 = vadd.f32 %v834, %v927
      %v929 = vand.u32 %v494, 4294901760
      %930 = vmatmul.f32.gmra.mxu0 %v929
      %v931 = vpop.f32.mrf.mxu0
      %v932 = vadd.f32 %v840, %v931
      %v933 = vand.u32 %v497, 4294901760
      %934 = vmatmul.f32.gmra.mxu0 %v933
      %v935 = vpop.f32.mrf.mxu0
      %v936 = vadd.f32 %v846, %v935
      %v937 = vand.u32 %v500, 4294901760
      %938 = vmatmul.f32.gmra.mxu0 %v937
      %v939 = vpop.f32.mrf.mxu0
      %v940 = vadd.f32 %v852, %v939
      %v941 = vand.u32 %v503, 4294901760
      %942 = vmatmul.f32.gmra.mxu0 %v941
      %v943 = vpop.f32.mrf.mxu0
      %v944 = vadd.f32 %v858, %v943
      %v945 = vand.u32 %v506, 4294901760
      %946 = vmatmul.f32.gmra.mxu0 %v945
      %v947 = vpop.f32.mrf.mxu0
      %v948 = vadd.f32 %v864, %v947
      %v949 = vand.u32 %v509, 4294901760
      %950 = vmatmul.f32.gmra.mxu0 %v949
      %v951 = vpop.f32.mrf.mxu0
      %v952 = vadd.f32 %v870, %v951
      %v953 = vand.u32 %v512, 4294901760
      %954 = vmatmul.f32.gmra.mxu0 %v953
      %v955 = vpop.f32.mrf.mxu0
      %v956 = vadd.f32 %v876, %v955
      %v957 = vand.u32 %v515, 4294901760
      %958 = vmatmul.f32.gmra.mxu0 %v957
      %v959 = vpop.f32.mrf.mxu0
      %v960 = vadd.f32 %v882, %v959
      %v961 = vand.u32 %v518, 4294901760
      %962 = vmatmul.f32.gmra.mxu0 %v961
      %v963 = vpop.f32.mrf.mxu0
      %v964 = vadd.f32 %v888, %v963
      %v965 = vand.u32 %v521, 4294901760
      %966 = vmatmul.f32.gmra.mxu0 %v965
      %v967 = vpop.f32.mrf.mxu0
      %v968 = vadd.f32 %v894, %v967
      %v969 = vand.u32 %v524, 4294901760
      %970 = vmatmul.f32.gmra.mxu0 %v969
      %v971 = vpop.f32.mrf.mxu0
      %v972 = vadd.f32 %v900, %v971
      %973 = vdwg.mxu0
      %974 = vmatpush.msra.mxu0 0.0
      %975 = vmatpush.msra.mxu0 0.0
      %976 = vmatpush.msra.mxu0 0.0
      %977 = vmatpush.msra.mxu0 0.0
      %978 = vmatpush.msra.mxu0 0.0
      %979 = vmatpush.msra.mxu0 0.0
      %980 = vmatpush.msra.mxu0 0.0
      %981 = vmatpush.msra.mxu0 0.0
      %982 = vmatpush.msra.mxu0 0.0
      %983 = vmatpush.msra.mxu0 0.0
      %984 = vmatpush.msra.mxu0 0.0
      %985 = vmatpush.msra.mxu0 0.0
      %986 = vmatpush.msra.mxu0 0.0
      %987 = vmatpush.msra.mxu0 0.0
      %988 = vmatpush.msra.mxu0 0.0
      %v989 = vand.u32 %v402, 4294901760
      %990 = vmatpush.msra.mxu0 %v989
      %v991 = vand.u32 %v488, 4294901760
      %992 = vmatmul.f32.gmra.mxu0 %v991
      %v993 = vpop.f32.mrf.mxu0
      %v994 = vadd.f32 %v924, %v993
      %v995 = vand.u32 %v491, 4294901760
      %996 = vmatmul.f32.gmra.mxu0 %v995
      %v997 = vpop.f32.mrf.mxu0
      %v998 = vadd.f32 %v928, %v997
      %v999 = vand.u32 %v494, 4294901760
      %1000 = vmatmul.f32.gmra.mxu0 %v999
      %v1001 = vpop.f32.mrf.mxu0
      %v1002 = vadd.f32 %v932, %v1001
      %v1003 = vand.u32 %v497, 4294901760
      %1004 = vmatmul.f32.gmra.mxu0 %v1003
      %v1005 = vpop.f32.mrf.mxu0
      %v1006 = vadd.f32 %v936, %v1005
      %v1007 = vand.u32 %v500, 4294901760
      %1008 = vmatmul.f32.gmra.mxu0 %v1007
      %v1009 = vpop.f32.mrf.mxu0
      %v1010 = vadd.f32 %v940, %v1009
      %v1011 = vand.u32 %v503, 4294901760
      %1012 = vmatmul.f32.gmra.mxu0 %v1011
      %v1013 = vpop.f32.mrf.mxu0
      %v1014 = vadd.f32 %v944, %v1013
      %v1015 = vand.u32 %v506, 4294901760
      %1016 = vmatmul.f32.gmra.mxu0 %v1015
      %v1017 = vpop.f32.mrf.mxu0
      %v1018 = vadd.f32 %v948, %v1017
      %v1019 = vand.u32 %v509, 4294901760
      %1020 = vmatmul.f32.gmra.mxu0 %v1019
      %v1021 = vpop.f32.mrf.mxu0
      %v1022 = vadd.f32 %v952, %v1021
      %v1023 = vand.u32 %v512, 4294901760
      %1024 = vmatmul.f32.gmra.mxu0 %v1023
      %v1025 = vpop.f32.mrf.mxu0
      %v1026 = vadd.f32 %v956, %v1025
      %v1027 = vand.u32 %v515, 4294901760
      %1028 = vmatmul.f32.gmra.mxu0 %v1027
      %v1029 = vpop.f32.mrf.mxu0
      %v1030 = vadd.f32 %v960, %v1029
      %v1031 = vand.u32 %v518, 4294901760
      %1032 = vmatmul.f32.gmra.mxu0 %v1031
      %v1033 = vpop.f32.mrf.mxu0
      %v1034 = vadd.f32 %v964, %v1033
      %v1035 = vand.u32 %v521, 4294901760
      %1036 = vmatmul.f32.gmra.mxu0 %v1035
      %v1037 = vpop.f32.mrf.mxu0
      %v1038 = vadd.f32 %v968, %v1037
      %v1039 = vand.u32 %v524, 4294901760
      %1040 = vmatmul.f32.gmra.mxu0 %v1039
      %v1041 = vpop.f32.mrf.mxu0
      %v1042 = vadd.f32 %v972, %v1041
      %1043 = vdwg.mxu0
      %v1045 = vperm.slane %v419, 0
      %v1047 = vadd.f32 %v1045, %v474
      %v1048 = vadd.f32 %v1045, %v475
      %v1049 = vadd.f32 %v1045, %v476
      %v1050 = vadd.f32 %v1045, %v477
      %v1051 = vadd.f32 %v1045, %v478
      %v1052 = vadd.f32 %v1045, %v479
      %v1053 = vadd.f32 %v1045, %v480
      %v1054 = vadd.f32 %v1045, %v481
      %v1055 = vadd.f32 %v1045, %v482
      %v1056 = vadd.f32 %v1045, %v483
      %v1057 = vadd.f32 %v1045, %v484
      %v1058 = vadd.f32 %v1045, %v485
      %v1059 = vadd.f32 %v1045, %v486
      %v1060 = vadd.f32 %v1047, %v994
      %v1061 = vadd.f32 %v1048, %v998
      %v1062 = vadd.f32 %v1049, %v1002
      %v1063 = vadd.f32 %v1050, %v1006
      %v1064 = vadd.f32 %v1051, %v1010
      %v1065 = vadd.f32 %v1052, %v1014
      %v1066 = vadd.f32 %v1053, %v1018
      %v1067 = vadd.f32 %v1054, %v1022
      %v1068 = vadd.f32 %v1055, %v1026
      %v1069 = vadd.f32 %v1056, %v1030
      %v1070 = vadd.f32 %v1057, %v1034
      %v1071 = vadd.f32 %v1058, %v1038
      %v1072 = vadd.f32 %v1059, %v1042
      %1073 = vmin.index.xlane.f32.xlu0 %v1060
      %v1074 = vpop.xlane.xlu0 %1073
      %1075 = vmin.index.xlane.f32.xlu0 %v1061
      %v1076 = vpop.xlane.xlu0 %1075
      %1077 = vmin.index.xlane.f32.xlu0 %v1062
      %v1078 = vpop.xlane.xlu0 %1077
      %1079 = vmin.index.xlane.f32.xlu0 %v1063
      %v1080 = vpop.xlane.xlu0 %1079
      %1081 = vmin.index.xlane.f32.xlu0 %v1064
      %v1082 = vpop.xlane.xlu0 %1081
      %1083 = vmin.index.xlane.f32.xlu0 %v1065
      %v1084 = vpop.xlane.xlu0 %1083
      %1085 = vmin.index.xlane.f32.xlu0 %v1066
      %v1086 = vpop.xlane.xlu0 %1085
      %1087 = vmin.index.xlane.f32.xlu0 %v1067
      %v1088 = vpop.xlane.xlu0 %1087
      %1089 = vmin.index.xlane.f32.xlu0 %v1068
      %v1090 = vpop.xlane.xlu0 %1089
      %1091 = vmin.index.xlane.f32.xlu0 %v1069
      %v1092 = vpop.xlane.xlu0 %1091
      %1093 = vmin.index.xlane.f32.xlu0 %v1070
      %v1094 = vpop.xlane.xlu0 %1093
      %1095 = vmin.index.xlane.f32.xlu0 %v1071
      %v1096 = vpop.xlane.xlu0 %1095
      %vm1097 = vcmask 1043456
      %v1098 = vsel %vm1097, %v1072, inf
      %1099 = vmin.index.xlane.f32.xlu0 %v1098
      %v1100 = vpop.xlane.xlu0 %1099
      %v1101 = vlaneseq
      %v1102 = vand.u32 %v1101, 127
      %vm1103 = vcmp.eq.s32.totalorder %v1102, %v1074
      %vm1104 = vcmp.eq.s32.totalorder %v1102, %v1076
      %vm1105 = vcmp.eq.s32.totalorder %v1102, %v1078
      %vm1106 = vcmp.eq.s32.totalorder %v1102, %v1080
      %vm1107 = vcmp.eq.s32.totalorder %v1102, %v1082
      %vm1108 = vcmp.eq.s32.totalorder %v1102, %v1084
      %vm1109 = vcmp.eq.s32.totalorder %v1102, %v1086
      %vm1110 = vcmp.eq.s32.totalorder %v1102, %v1088
      %vm1111 = vcmp.eq.s32.totalorder %v1102, %v1090
      %vm1112 = vcmp.eq.s32.totalorder %v1102, %v1092
      %vm1113 = vcmp.eq.s32.totalorder %v1102, %v1094
      %vm1114 = vcmp.eq.s32.totalorder %v1102, %v1096
      %vm1115 = vcmp.eq.s32.totalorder %v1102, %v1100
      %v1116 = vsel %vm1103, 1, 0
      %v1117 = vsel %vm1104, 1, 0
      %v1118 = vsel %vm1105, 1, 0
      %v1119 = vsel %vm1106, 1, 0
      %v1120 = vsel %vm1107, 1, 0
      %v1121 = vsel %vm1108, 1, 0
      %v1122 = vsel %vm1109, 1, 0
      %v1123 = vsel %vm1110, 1, 0
      %v1124 = vsel %vm1111, 1, 0
      %v1125 = vsel %vm1112, 1, 0
      %v1126 = vsel %vm1113, 1, 0
      %v1127 = vsel %vm1114, 1, 0
      %v1128 = vsel %vm1115, 1, 0
      %v1129 = vcvt.s32.f32 %v1116
      %v1130 = vcvt.s32.f32 %v1117
      %v1131 = vcvt.s32.f32 %v1118
      %v1132 = vcvt.s32.f32 %v1119
      %v1133 = vcvt.s32.f32 %v1120
      %v1134 = vcvt.s32.f32 %v1121
      %v1135 = vcvt.s32.f32 %v1122
      %v1136 = vcvt.s32.f32 %v1123
      %v1137 = vcvt.s32.f32 %v1124
      %v1138 = vcvt.s32.f32 %v1125
      %v1139 = vcvt.s32.f32 %v1126
      %v1140 = vcvt.s32.f32 %v1127
      %v1141 = vcvt.s32.f32 %v1128
      %v1142 = vand.u32 %v418, 4294901760
      %1143 = vmatpush.msra.mxu0 %v1142
      %v1144 = vand.u32 %v417, 4294901760
      %1145 = vmatpush.msra.mxu0 %v1144
      %v1146 = vand.u32 %v416, 4294901760
      %1147 = vmatpush.msra.mxu0 %v1146
      %v1148 = vand.u32 %v415, 4294901760
      %1149 = vmatpush.msra.mxu0 %v1148
      %v1150 = vand.u32 %v414, 4294901760
      %1151 = vmatpush.msra.mxu0 %v1150
      %v1152 = vand.u32 %v413, 4294901760
      %1153 = vmatpush.msra.mxu0 %v1152
      %v1154 = vand.u32 %v412, 4294901760
      %1155 = vmatpush.msra.mxu0 %v1154
      %v1156 = vand.u32 %v411, 4294901760
      %1157 = vmatpush.msra.mxu0 %v1156
      %v1158 = vand.u32 %v410, 4294901760
      %1159 = vmatpush.msra.mxu0 %v1158
      %v1160 = vand.u32 %v409, 4294901760
      %1161 = vmatpush.msra.mxu0 %v1160
      %v1162 = vand.u32 %v408, 4294901760
      %1163 = vmatpush.msra.mxu0 %v1162
      %v1164 = vand.u32 %v407, 4294901760
      %1165 = vmatpush.msra.mxu0 %v1164
      %v1166 = vand.u32 %v406, 4294901760
      %1167 = vmatpush.msra.mxu0 %v1166
      %v1168 = vand.u32 %v405, 4294901760
      %1169 = vmatpush.msra.mxu0 %v1168
      %v1170 = vand.u32 %v404, 4294901760
      %1171 = vmatpush.msra.mxu0 %v1170
      %v1172 = vand.u32 %v403, 4294901760
      %1173 = vmatpush.msra.mxu0 %v1172
      %v1174 = vand.u32 %v1129, 4294901760
      %v1175 = vsub.f32 %v1129, %v1174
      %v1176 = vand.u32 %v1175, 4294901760
      %v1177 = vsub.f32 %v1175, %v1176
      %v1178 = vand.u32 %v1177, 4294901760
      %1179 = vmatmul.f32.gmra.mxu0 %v1178
      %v1180 = vpop.f32.mrf.mxu0
      %v1181 = vadd.f32 0.0, %v1180
      %v1182 = vand.u32 %v1130, 4294901760
      %v1183 = vsub.f32 %v1130, %v1182
      %v1184 = vand.u32 %v1183, 4294901760
      %v1185 = vsub.f32 %v1183, %v1184
      %v1186 = vand.u32 %v1185, 4294901760
      %1187 = vmatmul.f32.gmra.mxu0 %v1186
      %v1188 = vpop.f32.mrf.mxu0
      %v1189 = vadd.f32 0.0, %v1188
      %v1190 = vand.u32 %v1131, 4294901760
      %v1191 = vsub.f32 %v1131, %v1190
      %v1192 = vand.u32 %v1191, 4294901760
      %v1193 = vsub.f32 %v1191, %v1192
      %v1194 = vand.u32 %v1193, 4294901760
      %1195 = vmatmul.f32.gmra.mxu0 %v1194
      %v1196 = vpop.f32.mrf.mxu0
      %v1197 = vadd.f32 0.0, %v1196
      %v1198 = vand.u32 %v1132, 4294901760
      %v1199 = vsub.f32 %v1132, %v1198
      %v1200 = vand.u32 %v1199, 4294901760
      %v1201 = vsub.f32 %v1199, %v1200
      %v1202 = vand.u32 %v1201, 4294901760
      %1203 = vmatmul.f32.gmra.mxu0 %v1202
      %v1204 = vpop.f32.mrf.mxu0
      %v1205 = vadd.f32 0.0, %v1204
      %v1206 = vand.u32 %v1133, 4294901760
      %v1207 = vsub.f32 %v1133, %v1206
      %v1208 = vand.u32 %v1207, 4294901760
      %v1209 = vsub.f32 %v1207, %v1208
      %v1210 = vand.u32 %v1209, 4294901760
      %1211 = vmatmul.f32.gmra.mxu0 %v1210
      %v1212 = vpop.f32.mrf.mxu0
      %v1213 = vadd.f32 0.0, %v1212
      %v1214 = vand.u32 %v1134, 4294901760
      %v1215 = vsub.f32 %v1134, %v1214
      %v1216 = vand.u32 %v1215, 4294901760
      %v1217 = vsub.f32 %v1215, %v1216
      %v1218 = vand.u32 %v1217, 4294901760
      %1219 = vmatmul.f32.gmra.mxu0 %v1218
      %v1220 = vpop.f32.mrf.mxu0
      %v1221 = vadd.f32 0.0, %v1220
      %v1222 = vand.u32 %v1135, 4294901760
      %v1223 = vsub.f32 %v1135, %v1222
      %v1224 = vand.u32 %v1223, 4294901760
      %v1225 = vsub.f32 %v1223, %v1224
      %v1226 = vand.u32 %v1225, 4294901760
      %1227 = vmatmul.f32.gmra.mxu0 %v1226
      %v1228 = vpop.f32.mrf.mxu0
      %v1229 = vadd.f32 0.0, %v1228
      %v1230 = vand.u32 %v1136, 4294901760
      %v1231 = vsub.f32 %v1136, %v1230
      %v1232 = vand.u32 %v1231, 4294901760
      %v1233 = vsub.f32 %v1231, %v1232
      %v1234 = vand.u32 %v1233, 4294901760
      %1235 = vmatmul.f32.gmra.mxu0 %v1234
      %v1236 = vpop.f32.mrf.mxu0
      %v1237 = vadd.f32 0.0, %v1236
      %v1238 = vand.u32 %v1137, 4294901760
      %v1239 = vsub.f32 %v1137, %v1238
      %v1240 = vand.u32 %v1239, 4294901760
      %v1241 = vsub.f32 %v1239, %v1240
      %v1242 = vand.u32 %v1241, 4294901760
      %1243 = vmatmul.f32.gmra.mxu0 %v1242
      %v1244 = vpop.f32.mrf.mxu0
      %v1245 = vadd.f32 0.0, %v1244
      %v1246 = vand.u32 %v1138, 4294901760
      %v1247 = vsub.f32 %v1138, %v1246
      %v1248 = vand.u32 %v1247, 4294901760
      %v1249 = vsub.f32 %v1247, %v1248
      %v1250 = vand.u32 %v1249, 4294901760
      %1251 = vmatmul.f32.gmra.mxu0 %v1250
      %v1252 = vpop.f32.mrf.mxu0
      %v1253 = vadd.f32 0.0, %v1252
      %v1254 = vand.u32 %v1139, 4294901760
      %v1255 = vsub.f32 %v1139, %v1254
      %v1256 = vand.u32 %v1255, 4294901760
      %v1257 = vsub.f32 %v1255, %v1256
      %v1258 = vand.u32 %v1257, 4294901760
      %1259 = vmatmul.f32.gmra.mxu0 %v1258
      %v1260 = vpop.f32.mrf.mxu0
      %v1261 = vadd.f32 0.0, %v1260
      %v1262 = vand.u32 %v1140, 4294901760
      %v1263 = vsub.f32 %v1140, %v1262
      %v1264 = vand.u32 %v1263, 4294901760
      %v1265 = vsub.f32 %v1263, %v1264
      %v1266 = vand.u32 %v1265, 4294901760
      %1267 = vmatmul.f32.gmra.mxu0 %v1266
      %v1268 = vpop.f32.mrf.mxu0
      %v1269 = vadd.f32 0.0, %v1268
      %v1270 = vand.u32 %v1141, 4294901760
      %v1271 = vsub.f32 %v1141, %v1270
      %v1272 = vand.u32 %v1271, 4294901760
      %v1273 = vsub.f32 %v1271, %v1272
      %v1274 = vand.u32 %v1273, 4294901760
      %1275 = vmatmul.f32.gmra.mxu0 %v1274
      %v1276 = vpop.f32.mrf.mxu0
      %v1277 = vadd.f32 0.0, %v1276
      %1278 = vdwg.mxu0
      %v1279 = vand.u32 %v418, 4294901760
      %v1280 = vsub.f32 %v418, %v1279
      %v1281 = vand.u32 %v1280, 4294901760
      %v1282 = vsub.f32 %v1280, %v1281
      %v1283 = vand.u32 %v1282, 4294901760
      %1284 = vmatpush.msra.mxu0 %v1283
      %v1285 = vand.u32 %v417, 4294901760
      %v1286 = vsub.f32 %v417, %v1285
      %v1287 = vand.u32 %v1286, 4294901760
      %v1288 = vsub.f32 %v1286, %v1287
      %v1289 = vand.u32 %v1288, 4294901760
      %1290 = vmatpush.msra.mxu0 %v1289
      %v1291 = vand.u32 %v416, 4294901760
      %v1292 = vsub.f32 %v416, %v1291
      %v1293 = vand.u32 %v1292, 4294901760
      %v1294 = vsub.f32 %v1292, %v1293
      %v1295 = vand.u32 %v1294, 4294901760
      %1296 = vmatpush.msra.mxu0 %v1295
      %v1297 = vand.u32 %v415, 4294901760
      %v1298 = vsub.f32 %v415, %v1297
      %v1299 = vand.u32 %v1298, 4294901760
      %v1300 = vsub.f32 %v1298, %v1299
      %v1301 = vand.u32 %v1300, 4294901760
      %1302 = vmatpush.msra.mxu0 %v1301
      %v1303 = vand.u32 %v414, 4294901760
      %v1304 = vsub.f32 %v414, %v1303
      %v1305 = vand.u32 %v1304, 4294901760
      %v1306 = vsub.f32 %v1304, %v1305
      %v1307 = vand.u32 %v1306, 4294901760
      %1308 = vmatpush.msra.mxu0 %v1307
      %v1309 = vand.u32 %v413, 4294901760
      %v1310 = vsub.f32 %v413, %v1309
      %v1311 = vand.u32 %v1310, 4294901760
      %v1312 = vsub.f32 %v1310, %v1311
      %v1313 = vand.u32 %v1312, 4294901760
      %1314 = vmatpush.msra.mxu0 %v1313
      %v1315 = vand.u32 %v412, 4294901760
      %v1316 = vsub.f32 %v412, %v1315
      %v1317 = vand.u32 %v1316, 4294901760
      %v1318 = vsub.f32 %v1316, %v1317
      %v1319 = vand.u32 %v1318, 4294901760
      %1320 = vmatpush.msra.mxu0 %v1319
      %v1321 = vand.u32 %v411, 4294901760
      %v1322 = vsub.f32 %v411, %v1321
      %v1323 = vand.u32 %v1322, 4294901760
      %v1324 = vsub.f32 %v1322, %v1323
      %v1325 = vand.u32 %v1324, 4294901760
      %1326 = vmatpush.msra.mxu0 %v1325
      %v1327 = vand.u32 %v410, 4294901760
      %v1328 = vsub.f32 %v410, %v1327
      %v1329 = vand.u32 %v1328, 4294901760
      %v1330 = vsub.f32 %v1328, %v1329
      %v1331 = vand.u32 %v1330, 4294901760
      %1332 = vmatpush.msra.mxu0 %v1331
      %v1333 = vand.u32 %v409, 4294901760
      %v1334 = vsub.f32 %v409, %v1333
      %v1335 = vand.u32 %v1334, 4294901760
      %v1336 = vsub.f32 %v1334, %v1335
      %v1337 = vand.u32 %v1336, 4294901760
      %1338 = vmatpush.msra.mxu0 %v1337
      %v1339 = vand.u32 %v408, 4294901760
      %v1340 = vsub.f32 %v408, %v1339
      %v1341 = vand.u32 %v1340, 4294901760
      %v1342 = vsub.f32 %v1340, %v1341
      %v1343 = vand.u32 %v1342, 4294901760
      %1344 = vmatpush.msra.mxu0 %v1343
      %v1345 = vand.u32 %v407, 4294901760
      %v1346 = vsub.f32 %v407, %v1345
      %v1347 = vand.u32 %v1346, 4294901760
      %v1348 = vsub.f32 %v1346, %v1347
      %v1349 = vand.u32 %v1348, 4294901760
      %1350 = vmatpush.msra.mxu0 %v1349
      %v1351 = vand.u32 %v406, 4294901760
      %v1352 = vsub.f32 %v406, %v1351
      %v1353 = vand.u32 %v1352, 4294901760
      %v1354 = vsub.f32 %v1352, %v1353
      %v1355 = vand.u32 %v1354, 4294901760
      %1356 = vmatpush.msra.mxu0 %v1355
      %v1357 = vand.u32 %v405, 4294901760
      %v1358 = vsub.f32 %v405, %v1357
      %v1359 = vand.u32 %v1358, 4294901760
      %v1360 = vsub.f32 %v1358, %v1359
      %v1361 = vand.u32 %v1360, 4294901760
      %1362 = vmatpush.msra.mxu0 %v1361
      %v1363 = vand.u32 %v404, 4294901760
      %v1364 = vsub.f32 %v404, %v1363
      %v1365 = vand.u32 %v1364, 4294901760
      %v1366 = vsub.f32 %v1364, %v1365
      %v1367 = vand.u32 %v1366, 4294901760
      %1368 = vmatpush.msra.mxu0 %v1367
      %v1369 = vand.u32 %v403, 4294901760
      %v1370 = vsub.f32 %v403, %v1369
      %v1371 = vand.u32 %v1370, 4294901760
      %v1372 = vsub.f32 %v1370, %v1371
      %v1373 = vand.u32 %v1372, 4294901760
      %1374 = vmatpush.msra.mxu0 %v1373
      %v1375 = vand.u32 %v1129, 4294901760
      %1376 = vmatmul.f32.gmra.mxu0 %v1375
      %v1377 = vpop.f32.mrf.mxu0
      %v1378 = vadd.f32 %v1181, %v1377
      %v1379 = vand.u32 %v1130, 4294901760
      %1380 = vmatmul.f32.gmra.mxu0 %v1379
      %v1381 = vpop.f32.mrf.mxu0
      %v1382 = vadd.f32 %v1189, %v1381
      %v1383 = vand.u32 %v1131, 4294901760
      %1384 = vmatmul.f32.gmra.mxu0 %v1383
      %v1385 = vpop.f32.mrf.mxu0
      %v1386 = vadd.f32 %v1197, %v1385
      %v1387 = vand.u32 %v1132, 4294901760
      %1388 = vmatmul.f32.gmra.mxu0 %v1387
      %v1389 = vpop.f32.mrf.mxu0
      %v1390 = vadd.f32 %v1205, %v1389
      %v1391 = vand.u32 %v1133, 4294901760
      %1392 = vmatmul.f32.gmra.mxu0 %v1391
      %v1393 = vpop.f32.mrf.mxu0
      %v1394 = vadd.f32 %v1213, %v1393
      %v1395 = vand.u32 %v1134, 4294901760
      %1396 = vmatmul.f32.gmra.mxu0 %v1395
      %v1397 = vpop.f32.mrf.mxu0
      %v1398 = vadd.f32 %v1221, %v1397
      %v1399 = vand.u32 %v1135, 4294901760
      %1400 = vmatmul.f32.gmra.mxu0 %v1399
      %v1401 = vpop.f32.mrf.mxu0
      %v1402 = vadd.f32 %v1229, %v1401
      %v1403 = vand.u32 %v1136, 4294901760
      %1404 = vmatmul.f32.gmra.mxu0 %v1403
      %v1405 = vpop.f32.mrf.mxu0
      %v1406 = vadd.f32 %v1237, %v1405
      %v1407 = vand.u32 %v1137, 4294901760
      %1408 = vmatmul.f32.gmra.mxu0 %v1407
      %v1409 = vpop.f32.mrf.mxu0
      %v1410 = vadd.f32 %v1245, %v1409
      %v1411 = vand.u32 %v1138, 4294901760
      %1412 = vmatmul.f32.gmra.mxu0 %v1411
      %v1413 = vpop.f32.mrf.mxu0
      %v1414 = vadd.f32 %v1253, %v1413
      %v1415 = vand.u32 %v1139, 4294901760
      %1416 = vmatmul.f32.gmra.mxu0 %v1415
      %v1417 = vpop.f32.mrf.mxu0
      %v1418 = vadd.f32 %v1261, %v1417
      %v1419 = vand.u32 %v1140, 4294901760
      %1420 = vmatmul.f32.gmra.mxu0 %v1419
      %v1421 = vpop.f32.mrf.mxu0
      %v1422 = vadd.f32 %v1269, %v1421
      %v1423 = vand.u32 %v1141, 4294901760
      %1424 = vmatmul.f32.gmra.mxu0 %v1423
      %v1425 = vpop.f32.mrf.mxu0
      %v1426 = vadd.f32 %v1277, %v1425
      %1427 = vdwg.mxu0
      %v1428 = vand.u32 %v418, 4294901760
      %v1429 = vsub.f32 %v418, %v1428
      %1430 = vmatpush.msra.mxu0 %v1429
      %v1431 = vand.u32 %v417, 4294901760
      %v1432 = vsub.f32 %v417, %v1431
      %1433 = vmatpush.msra.mxu0 %v1432
      %v1434 = vand.u32 %v416, 4294901760
      %v1435 = vsub.f32 %v416, %v1434
      %1436 = vmatpush.msra.mxu0 %v1435
      %v1437 = vand.u32 %v415, 4294901760
      %v1438 = vsub.f32 %v415, %v1437
      %1439 = vmatpush.msra.mxu0 %v1438
      %v1440 = vand.u32 %v414, 4294901760
      %v1441 = vsub.f32 %v414, %v1440
      %1442 = vmatpush.msra.mxu0 %v1441
      %v1443 = vand.u32 %v413, 4294901760
      %v1444 = vsub.f32 %v413, %v1443
      %1445 = vmatpush.msra.mxu0 %v1444
      %v1446 = vand.u32 %v412, 4294901760
      %v1447 = vsub.f32 %v412, %v1446
      %1448 = vmatpush.msra.mxu0 %v1447
      %v1449 = vand.u32 %v411, 4294901760
      %v1450 = vsub.f32 %v411, %v1449
      %1451 = vmatpush.msra.mxu0 %v1450
      %v1452 = vand.u32 %v410, 4294901760
      %v1453 = vsub.f32 %v410, %v1452
      %1454 = vmatpush.msra.mxu0 %v1453
      %v1455 = vand.u32 %v409, 4294901760
      %v1456 = vsub.f32 %v409, %v1455
      %1457 = vmatpush.msra.mxu0 %v1456
      %v1458 = vand.u32 %v408, 4294901760
      %v1459 = vsub.f32 %v408, %v1458
      %1460 = vmatpush.msra.mxu0 %v1459
      %v1461 = vand.u32 %v407, 4294901760
      %v1462 = vsub.f32 %v407, %v1461
      %1463 = vmatpush.msra.mxu0 %v1462
      %v1464 = vand.u32 %v406, 4294901760
      %v1465 = vsub.f32 %v406, %v1464
      %1466 = vmatpush.msra.mxu0 %v1465
      %v1467 = vand.u32 %v405, 4294901760
      %v1468 = vsub.f32 %v405, %v1467
      %1469 = vmatpush.msra.mxu0 %v1468
      %v1470 = vand.u32 %v404, 4294901760
      %v1471 = vsub.f32 %v404, %v1470
      %1472 = vmatpush.msra.mxu0 %v1471
      %v1473 = vand.u32 %v403, 4294901760
      %v1474 = vsub.f32 %v403, %v1473
      %1475 = vmatpush.msra.mxu0 %v1474
      %v1476 = vand.u32 %v1129, 4294901760
      %v1477 = vsub.f32 %v1129, %v1476
      %1478 = vmatmul.f32.gmra.mxu0 %v1477
      %v1479 = vpop.f32.mrf.mxu0
      %v1480 = vadd.f32 %v1378, %v1479
      %v1481 = vand.u32 %v1130, 4294901760
      %v1482 = vsub.f32 %v1130, %v1481
      %1483 = vmatmul.f32.gmra.mxu0 %v1482
      %v1484 = vpop.f32.mrf.mxu0
      %v1485 = vadd.f32 %v1382, %v1484
      %v1486 = vand.u32 %v1131, 4294901760
      %v1487 = vsub.f32 %v1131, %v1486
      %1488 = vmatmul.f32.gmra.mxu0 %v1487
      %v1489 = vpop.f32.mrf.mxu0
      %v1490 = vadd.f32 %v1386, %v1489
      %v1491 = vand.u32 %v1132, 4294901760
      %v1492 = vsub.f32 %v1132, %v1491
      %1493 = vmatmul.f32.gmra.mxu0 %v1492
      %v1494 = vpop.f32.mrf.mxu0
      %v1495 = vadd.f32 %v1390, %v1494
      %v1496 = vand.u32 %v1133, 4294901760
      %v1497 = vsub.f32 %v1133, %v1496
      %1498 = vmatmul.f32.gmra.mxu0 %v1497
      %v1499 = vpop.f32.mrf.mxu0
      %v1500 = vadd.f32 %v1394, %v1499
      %v1501 = vand.u32 %v1134, 4294901760
      %v1502 = vsub.f32 %v1134, %v1501
      %1503 = vmatmul.f32.gmra.mxu0 %v1502
      %v1504 = vpop.f32.mrf.mxu0
      %v1505 = vadd.f32 %v1398, %v1504
      %v1506 = vand.u32 %v1135, 4294901760
      %v1507 = vsub.f32 %v1135, %v1506
      %1508 = vmatmul.f32.gmra.mxu0 %v1507
      %v1509 = vpop.f32.mrf.mxu0
      %v1510 = vadd.f32 %v1402, %v1509
      %v1511 = vand.u32 %v1136, 4294901760
      %v1512 = vsub.f32 %v1136, %v1511
      %1513 = vmatmul.f32.gmra.mxu0 %v1512
      %v1514 = vpop.f32.mrf.mxu0
      %v1515 = vadd.f32 %v1406, %v1514
      %v1516 = vand.u32 %v1137, 4294901760
      %v1517 = vsub.f32 %v1137, %v1516
      %1518 = vmatmul.f32.gmra.mxu0 %v1517
      %v1519 = vpop.f32.mrf.mxu0
      %v1520 = vadd.f32 %v1410, %v1519
      %v1521 = vand.u32 %v1138, 4294901760
      %v1522 = vsub.f32 %v1138, %v1521
      %1523 = vmatmul.f32.gmra.mxu0 %v1522
      %v1524 = vpop.f32.mrf.mxu0
      %v1525 = vadd.f32 %v1414, %v1524
      %v1526 = vand.u32 %v1139, 4294901760
      %v1527 = vsub.f32 %v1139, %v1526
      %1528 = vmatmul.f32.gmra.mxu0 %v1527
      %v1529 = vpop.f32.mrf.mxu0
      %v1530 = vadd.f32 %v1418, %v1529
      %v1531 = vand.u32 %v1140, 4294901760
      %v1532 = vsub.f32 %v1140, %v1531
      %1533 = vmatmul.f32.gmra.mxu0 %v1532
      %v1534 = vpop.f32.mrf.mxu0
      %v1535 = vadd.f32 %v1422, %v1534
      %v1536 = vand.u32 %v1141, 4294901760
      %v1537 = vsub.f32 %v1141, %v1536
      %1538 = vmatmul.f32.gmra.mxu0 %v1537
      %v1539 = vpop.f32.mrf.mxu0
      %v1540 = vadd.f32 %v1426, %v1539
      %1541 = vdwg.mxu0
      %v1542 = vand.u32 %v418, 4294901760
      %1543 = vmatpush.msra.mxu0 %v1542
      %v1544 = vand.u32 %v417, 4294901760
      %1545 = vmatpush.msra.mxu0 %v1544
      %v1546 = vand.u32 %v416, 4294901760
      %1547 = vmatpush.msra.mxu0 %v1546
      %v1548 = vand.u32 %v415, 4294901760
      %1549 = vmatpush.msra.mxu0 %v1548
      %v1550 = vand.u32 %v414, 4294901760
      %1551 = vmatpush.msra.mxu0 %v1550
      %v1552 = vand.u32 %v413, 4294901760
      %1553 = vmatpush.msra.mxu0 %v1552
      %v1554 = vand.u32 %v412, 4294901760
      %1555 = vmatpush.msra.mxu0 %v1554
      %v1556 = vand.u32 %v411, 4294901760
      %1557 = vmatpush.msra.mxu0 %v1556
      %v1558 = vand.u32 %v410, 4294901760
      %1559 = vmatpush.msra.mxu0 %v1558
      %v1560 = vand.u32 %v409, 4294901760
      %1561 = vmatpush.msra.mxu0 %v1560
      %v1562 = vand.u32 %v408, 4294901760
      %1563 = vmatpush.msra.mxu0 %v1562
      %v1564 = vand.u32 %v407, 4294901760
      %1565 = vmatpush.msra.mxu0 %v1564
      %v1566 = vand.u32 %v406, 4294901760
      %1567 = vmatpush.msra.mxu0 %v1566
      %v1568 = vand.u32 %v405, 4294901760
      %1569 = vmatpush.msra.mxu0 %v1568
      %v1570 = vand.u32 %v404, 4294901760
      %1571 = vmatpush.msra.mxu0 %v1570
      %v1572 = vand.u32 %v403, 4294901760
      %1573 = vmatpush.msra.mxu0 %v1572
      %v1574 = vand.u32 %v1129, 4294901760
      %v1575 = vsub.f32 %v1129, %v1574
      %v1576 = vand.u32 %v1575, 4294901760
      %1577 = vmatmul.f32.gmra.mxu0 %v1576
      %v1578 = vpop.f32.mrf.mxu0
      %v1579 = vadd.f32 %v1480, %v1578
      %v1580 = vand.u32 %v1130, 4294901760
      %v1581 = vsub.f32 %v1130, %v1580
      %v1582 = vand.u32 %v1581, 4294901760
      %1583 = vmatmul.f32.gmra.mxu0 %v1582
      %v1584 = vpop.f32.mrf.mxu0
      %v1585 = vadd.f32 %v1485, %v1584
      %v1586 = vand.u32 %v1131, 4294901760
      %v1587 = vsub.f32 %v1131, %v1586
      %v1588 = vand.u32 %v1587, 4294901760
      %1589 = vmatmul.f32.gmra.mxu0 %v1588
      %v1590 = vpop.f32.mrf.mxu0
      %v1591 = vadd.f32 %v1490, %v1590
      %v1592 = vand.u32 %v1132, 4294901760
      %v1593 = vsub.f32 %v1132, %v1592
      %v1594 = vand.u32 %v1593, 4294901760
      %1595 = vmatmul.f32.gmra.mxu0 %v1594
      %v1596 = vpop.f32.mrf.mxu0
      %v1597 = vadd.f32 %v1495, %v1596
      %v1598 = vand.u32 %v1133, 4294901760
      %v1599 = vsub.f32 %v1133, %v1598
      %v1600 = vand.u32 %v1599, 4294901760
      %1601 = vmatmul.f32.gmra.mxu0 %v1600
      %v1602 = vpop.f32.mrf.mxu0
      %v1603 = vadd.f32 %v1500, %v1602
      %v1604 = vand.u32 %v1134, 4294901760
      %v1605 = vsub.f32 %v1134, %v1604
      %v1606 = vand.u32 %v1605, 4294901760
      %1607 = vmatmul.f32.gmra.mxu0 %v1606
      %v1608 = vpop.f32.mrf.mxu0
      %v1609 = vadd.f32 %v1505, %v1608
      %v1610 = vand.u32 %v1135, 4294901760
      %v1611 = vsub.f32 %v1135, %v1610
      %v1612 = vand.u32 %v1611, 4294901760
      %1613 = vmatmul.f32.gmra.mxu0 %v1612
      %v1614 = vpop.f32.mrf.mxu0
      %v1615 = vadd.f32 %v1510, %v1614
      %v1616 = vand.u32 %v1136, 4294901760
      %v1617 = vsub.f32 %v1136, %v1616
      %v1618 = vand.u32 %v1617, 4294901760
      %1619 = vmatmul.f32.gmra.mxu0 %v1618
      %v1620 = vpop.f32.mrf.mxu0
      %v1621 = vadd.f32 %v1515, %v1620
      %v1622 = vand.u32 %v1137, 4294901760
      %v1623 = vsub.f32 %v1137, %v1622
      %v1624 = vand.u32 %v1623, 4294901760
      %1625 = vmatmul.f32.gmra.mxu0 %v1624
      %v1626 = vpop.f32.mrf.mxu0
      %v1627 = vadd.f32 %v1520, %v1626
      %v1628 = vand.u32 %v1138, 4294901760
      %v1629 = vsub.f32 %v1138, %v1628
      %v1630 = vand.u32 %v1629, 4294901760
      %1631 = vmatmul.f32.gmra.mxu0 %v1630
      %v1632 = vpop.f32.mrf.mxu0
      %v1633 = vadd.f32 %v1525, %v1632
      %v1634 = vand.u32 %v1139, 4294901760
      %v1635 = vsub.f32 %v1139, %v1634
      %v1636 = vand.u32 %v1635, 4294901760
      %1637 = vmatmul.f32.gmra.mxu0 %v1636
      %v1638 = vpop.f32.mrf.mxu0
      %v1639 = vadd.f32 %v1530, %v1638
      %v1640 = vand.u32 %v1140, 4294901760
      %v1641 = vsub.f32 %v1140, %v1640
      %v1642 = vand.u32 %v1641, 4294901760
      %1643 = vmatmul.f32.gmra.mxu0 %v1642
      %v1644 = vpop.f32.mrf.mxu0
      %v1645 = vadd.f32 %v1535, %v1644
      %v1646 = vand.u32 %v1141, 4294901760
      %v1647 = vsub.f32 %v1141, %v1646
      %v1648 = vand.u32 %v1647, 4294901760
      %1649 = vmatmul.f32.gmra.mxu0 %v1648
      %v1650 = vpop.f32.mrf.mxu0
      %v1651 = vadd.f32 %v1540, %v1650
      %1652 = vdwg.mxu0
      %v1653 = vand.u32 %v418, 4294901760
      %v1654 = vsub.f32 %v418, %v1653
      %v1655 = vand.u32 %v1654, 4294901760
      %1656 = vmatpush.msra.mxu0 %v1655
      %v1657 = vand.u32 %v417, 4294901760
      %v1658 = vsub.f32 %v417, %v1657
      %v1659 = vand.u32 %v1658, 4294901760
      %1660 = vmatpush.msra.mxu0 %v1659
      %v1661 = vand.u32 %v416, 4294901760
      %v1662 = vsub.f32 %v416, %v1661
      %v1663 = vand.u32 %v1662, 4294901760
      %1664 = vmatpush.msra.mxu0 %v1663
      %v1665 = vand.u32 %v415, 4294901760
      %v1666 = vsub.f32 %v415, %v1665
      %v1667 = vand.u32 %v1666, 4294901760
      %1668 = vmatpush.msra.mxu0 %v1667
      %v1669 = vand.u32 %v414, 4294901760
      %v1670 = vsub.f32 %v414, %v1669
      %v1671 = vand.u32 %v1670, 4294901760
      %1672 = vmatpush.msra.mxu0 %v1671
      %v1673 = vand.u32 %v413, 4294901760
      %v1674 = vsub.f32 %v413, %v1673
      %v1675 = vand.u32 %v1674, 4294901760
      %1676 = vmatpush.msra.mxu0 %v1675
      %v1677 = vand.u32 %v412, 4294901760
      %v1678 = vsub.f32 %v412, %v1677
      %v1679 = vand.u32 %v1678, 4294901760
      %1680 = vmatpush.msra.mxu0 %v1679
      %v1681 = vand.u32 %v411, 4294901760
      %v1682 = vsub.f32 %v411, %v1681
      %v1683 = vand.u32 %v1682, 4294901760
      %1684 = vmatpush.msra.mxu0 %v1683
      %v1685 = vand.u32 %v410, 4294901760
      %v1686 = vsub.f32 %v410, %v1685
      %v1687 = vand.u32 %v1686, 4294901760
      %1688 = vmatpush.msra.mxu0 %v1687
      %v1689 = vand.u32 %v409, 4294901760
      %v1690 = vsub.f32 %v409, %v1689
      %v1691 = vand.u32 %v1690, 4294901760
      %1692 = vmatpush.msra.mxu0 %v1691
      %v1693 = vand.u32 %v408, 4294901760
      %v1694 = vsub.f32 %v408, %v1693
      %v1695 = vand.u32 %v1694, 4294901760
      %1696 = vmatpush.msra.mxu0 %v1695
      %v1697 = vand.u32 %v407, 4294901760
      %v1698 = vsub.f32 %v407, %v1697
      %v1699 = vand.u32 %v1698, 4294901760
      %1700 = vmatpush.msra.mxu0 %v1699
      %v1701 = vand.u32 %v406, 4294901760
      %v1702 = vsub.f32 %v406, %v1701
      %v1703 = vand.u32 %v1702, 4294901760
      %1704 = vmatpush.msra.mxu0 %v1703
      %v1705 = vand.u32 %v405, 4294901760
      %v1706 = vsub.f32 %v405, %v1705
      %v1707 = vand.u32 %v1706, 4294901760
      %1708 = vmatpush.msra.mxu0 %v1707
      %v1709 = vand.u32 %v404, 4294901760
      %v1710 = vsub.f32 %v404, %v1709
      %v1711 = vand.u32 %v1710, 4294901760
      %1712 = vmatpush.msra.mxu0 %v1711
      %v1713 = vand.u32 %v403, 4294901760
      %v1714 = vsub.f32 %v403, %v1713
      %v1715 = vand.u32 %v1714, 4294901760
      %1716 = vmatpush.msra.mxu0 %v1715
      %v1717 = vand.u32 %v1129, 4294901760
      %1718 = vmatmul.f32.gmra.mxu0 %v1717
      %v1719 = vpop.f32.mrf.mxu0
      %v1720 = vadd.f32 %v1579, %v1719
      %v1721 = vand.u32 %v1130, 4294901760
      %1722 = vmatmul.f32.gmra.mxu0 %v1721
      %v1723 = vpop.f32.mrf.mxu0
      %v1724 = vadd.f32 %v1585, %v1723
      %v1725 = vand.u32 %v1131, 4294901760
      %1726 = vmatmul.f32.gmra.mxu0 %v1725
      %v1727 = vpop.f32.mrf.mxu0
      %v1728 = vadd.f32 %v1591, %v1727
      %v1729 = vand.u32 %v1132, 4294901760
      %1730 = vmatmul.f32.gmra.mxu0 %v1729
      %v1731 = vpop.f32.mrf.mxu0
      %v1732 = vadd.f32 %v1597, %v1731
      %v1733 = vand.u32 %v1133, 4294901760
      %1734 = vmatmul.f32.gmra.mxu0 %v1733
      %v1735 = vpop.f32.mrf.mxu0
      %v1736 = vadd.f32 %v1603, %v1735
      %v1737 = vand.u32 %v1134, 4294901760
      %1738 = vmatmul.f32.gmra.mxu0 %v1737
      %v1739 = vpop.f32.mrf.mxu0
      %v1740 = vadd.f32 %v1609, %v1739
      %v1741 = vand.u32 %v1135, 4294901760
      %1742 = vmatmul.f32.gmra.mxu0 %v1741
      %v1743 = vpop.f32.mrf.mxu0
      %v1744 = vadd.f32 %v1615, %v1743
      %v1745 = vand.u32 %v1136, 4294901760
      %1746 = vmatmul.f32.gmra.mxu0 %v1745
      %v1747 = vpop.f32.mrf.mxu0
      %v1748 = vadd.f32 %v1621, %v1747
      %v1749 = vand.u32 %v1137, 4294901760
      %1750 = vmatmul.f32.gmra.mxu0 %v1749
      %v1751 = vpop.f32.mrf.mxu0
      %v1752 = vadd.f32 %v1627, %v1751
      %v1753 = vand.u32 %v1138, 4294901760
      %1754 = vmatmul.f32.gmra.mxu0 %v1753
      %v1755 = vpop.f32.mrf.mxu0
      %v1756 = vadd.f32 %v1633, %v1755
      %v1757 = vand.u32 %v1139, 4294901760
      %1758 = vmatmul.f32.gmra.mxu0 %v1757
      %v1759 = vpop.f32.mrf.mxu0
      %v1760 = vadd.f32 %v1639, %v1759
      %v1761 = vand.u32 %v1140, 4294901760
      %1762 = vmatmul.f32.gmra.mxu0 %v1761
      %v1763 = vpop.f32.mrf.mxu0
      %v1764 = vadd.f32 %v1645, %v1763
      %v1765 = vand.u32 %v1141, 4294901760
      %1766 = vmatmul.f32.gmra.mxu0 %v1765
      %v1767 = vpop.f32.mrf.mxu0
      %v1768 = vadd.f32 %v1651, %v1767
      %1769 = vdwg.mxu0
      %v1770 = vand.u32 %v418, 4294901760
      %1771 = vmatpush.msra.mxu0 %v1770
      %v1772 = vand.u32 %v417, 4294901760
      %1773 = vmatpush.msra.mxu0 %v1772
      %v1774 = vand.u32 %v416, 4294901760
      %1775 = vmatpush.msra.mxu0 %v1774
      %v1776 = vand.u32 %v415, 4294901760
      %1777 = vmatpush.msra.mxu0 %v1776
      %v1778 = vand.u32 %v414, 4294901760
      %1779 = vmatpush.msra.mxu0 %v1778
      %v1780 = vand.u32 %v413, 4294901760
      %1781 = vmatpush.msra.mxu0 %v1780
      %v1782 = vand.u32 %v412, 4294901760
      %1783 = vmatpush.msra.mxu0 %v1782
      %v1784 = vand.u32 %v411, 4294901760
      %1785 = vmatpush.msra.mxu0 %v1784
      %v1786 = vand.u32 %v410, 4294901760
      %1787 = vmatpush.msra.mxu0 %v1786
      %v1788 = vand.u32 %v409, 4294901760
      %1789 = vmatpush.msra.mxu0 %v1788
      %v1790 = vand.u32 %v408, 4294901760
      %1791 = vmatpush.msra.mxu0 %v1790
      %v1792 = vand.u32 %v407, 4294901760
      %1793 = vmatpush.msra.mxu0 %v1792
      %v1794 = vand.u32 %v406, 4294901760
      %1795 = vmatpush.msra.mxu0 %v1794
      %v1796 = vand.u32 %v405, 4294901760
      %1797 = vmatpush.msra.mxu0 %v1796
      %v1798 = vand.u32 %v404, 4294901760
      %1799 = vmatpush.msra.mxu0 %v1798
      %v1800 = vand.u32 %v403, 4294901760
      %1801 = vmatpush.msra.mxu0 %v1800
      %v1802 = vand.u32 %v1129, 4294901760
      %1803 = vmatmul.f32.gmra.mxu0 %v1802
      %v1804 = vpop.f32.mrf.mxu0
      %v1805 = vadd.f32 %v1720, %v1804
      %v1806 = vand.u32 %v1130, 4294901760
      %1807 = vmatmul.f32.gmra.mxu0 %v1806
      %v1808 = vpop.f32.mrf.mxu0
      %v1809 = vadd.f32 %v1724, %v1808
      %v1810 = vand.u32 %v1131, 4294901760
      %1811 = vmatmul.f32.gmra.mxu0 %v1810
      %v1812 = vpop.f32.mrf.mxu0
      %v1813 = vadd.f32 %v1728, %v1812
      %v1814 = vand.u32 %v1132, 4294901760
      %1815 = vmatmul.f32.gmra.mxu0 %v1814
      %v1816 = vpop.f32.mrf.mxu0
      %v1817 = vadd.f32 %v1732, %v1816
      %v1818 = vand.u32 %v1133, 4294901760
      %1819 = vmatmul.f32.gmra.mxu0 %v1818
      %v1820 = vpop.f32.mrf.mxu0
      %v1821 = vadd.f32 %v1736, %v1820
      %v1822 = vand.u32 %v1134, 4294901760
      %1823 = vmatmul.f32.gmra.mxu0 %v1822
      %v1824 = vpop.f32.mrf.mxu0
      %v1825 = vadd.f32 %v1740, %v1824
      %v1826 = vand.u32 %v1135, 4294901760
      %1827 = vmatmul.f32.gmra.mxu0 %v1826
      %v1828 = vpop.f32.mrf.mxu0
      %v1829 = vadd.f32 %v1744, %v1828
      %v1830 = vand.u32 %v1136, 4294901760
      %1831 = vmatmul.f32.gmra.mxu0 %v1830
      %v1832 = vpop.f32.mrf.mxu0
      %v1833 = vadd.f32 %v1748, %v1832
      %v1834 = vand.u32 %v1137, 4294901760
      %1835 = vmatmul.f32.gmra.mxu0 %v1834
      %v1836 = vpop.f32.mrf.mxu0
      %v1837 = vadd.f32 %v1752, %v1836
      %v1838 = vand.u32 %v1138, 4294901760
      %1839 = vmatmul.f32.gmra.mxu0 %v1838
      %v1840 = vpop.f32.mrf.mxu0
      %v1841 = vadd.f32 %v1756, %v1840
      %v1842 = vand.u32 %v1139, 4294901760
      %1843 = vmatmul.f32.gmra.mxu0 %v1842
      %v1844 = vpop.f32.mrf.mxu0
      %v1845 = vadd.f32 %v1760, %v1844
      %v1846 = vand.u32 %v1140, 4294901760
      %1847 = vmatmul.f32.gmra.mxu0 %v1846
      %v1848 = vpop.f32.mrf.mxu0
      %v1849 = vadd.f32 %v1764, %v1848
      %v1850 = vand.u32 %v1141, 4294901760
      %1851 = vmatmul.f32.gmra.mxu0 %v1850
      %v1852 = vpop.f32.mrf.mxu0
      %v1853 = vadd.f32 %v1768, %v1852
      %1854 = vdwg.mxu0
      %1855 = vst.msk [vmem:[%s367] sm:$0xff] %vm433, %v1805
      %1856 = vst.msk [vmem:[%s367 + $0x8] sm:$0xff] %vm433, %v1809
      %1857 = vst.msk [vmem:[%s367 + $0x10] sm:$0xff] %vm433, %v1813
      %1858 = vst.msk [vmem:[%s367 + $0x18] sm:$0xff] %vm433, %v1817
      %1859 = vst.msk [vmem:[%s367 + $0x20] sm:$0xff] %vm433, %v1821
      %1860 = vst.msk [vmem:[%s367 + $0x28] sm:$0xff] %vm433, %v1825
      %1861 = vst.msk [vmem:[%s367 + $0x30] sm:$0xff] %vm433, %v1829
      %1862 = vst.msk [vmem:[%s367 + $0x38] sm:$0xff] %vm433, %v1833
      %1863 = vst.msk [vmem:[%s367 + $0x40] sm:$0xff] %vm433, %v1837
      %1864 = vst.msk [vmem:[%s367 + $0x48] sm:$0xff] %vm433, %v1841
      %1865 = vst.msk [vmem:[%s367 + $0x50] sm:$0xff] %vm433, %v1845
      %1866 = vst.msk [vmem:[%s367 + $0x58] sm:$0xff] %vm433, %v1849
      %1867 = vst.msk [vmem:[%s367 + $0x60] sm:$0xf] %vm470, %v1853
      %vm1868 = vcmask 130048
      %1869 = vst.msk [vmem:[%s377] sm:$0xff] %vm1868, %v1129
      %1870 = vst.msk [vmem:[%s377 + $0x8] sm:$0xff] %vm1868, %v1130
      %1871 = vst.msk [vmem:[%s377 + $0x10] sm:$0xff] %vm1868, %v1131
      %1872 = vst.msk [vmem:[%s377 + $0x18] sm:$0xff] %vm1868, %v1132
      %1873 = vst.msk [vmem:[%s377 + $0x20] sm:$0xff] %vm1868, %v1133
      %1874 = vst.msk [vmem:[%s377 + $0x28] sm:$0xff] %vm1868, %v1134
      %1875 = vst.msk [vmem:[%s377 + $0x30] sm:$0xff] %vm1868, %v1135
      %1876 = vst.msk [vmem:[%s377 + $0x38] sm:$0xff] %vm1868, %v1136
      %1877 = vst.msk [vmem:[%s377 + $0x40] sm:$0xff] %vm1868, %v1137
      %1878 = vst.msk [vmem:[%s377 + $0x48] sm:$0xff] %vm1868, %v1138
      %1879 = vst.msk [vmem:[%s377 + $0x50] sm:$0xff] %vm1868, %v1139
      %1880 = vst.msk [vmem:[%s377 + $0x58] sm:$0xff] %vm1868, %v1140
      %vm1881 = vcmask 125952
      %1882 = vst.msk [vmem:[%s377 + $0x60] sm:$0xf] %vm1881, %v1141
      %1883 = vst.msk [vmem:[%s387] sm:$0xff] %vm1868, %v1060
      %1884 = vst.msk [vmem:[%s387 + $0x8] sm:$0xff] %vm1868, %v1061
      %1885 = vst.msk [vmem:[%s387 + $0x10] sm:$0xff] %vm1868, %v1062
      %1886 = vst.msk [vmem:[%s387 + $0x18] sm:$0xff] %vm1868, %v1063
      %1887 = vst.msk [vmem:[%s387 + $0x20] sm:$0xff] %vm1868, %v1064
      %1888 = vst.msk [vmem:[%s387 + $0x28] sm:$0xff] %vm1868, %v1065
      %1889 = vst.msk [vmem:[%s387 + $0x30] sm:$0xff] %vm1868, %v1066
      %1890 = vst.msk [vmem:[%s387 + $0x38] sm:$0xff] %vm1868, %v1067
      %1891 = vst.msk [vmem:[%s387 + $0x40] sm:$0xff] %vm1868, %v1068
      %1892 = vst.msk [vmem:[%s387 + $0x48] sm:$0xff] %vm1868, %v1069
      %1893 = vst.msk [vmem:[%s387 + $0x50] sm:$0xff] %vm1868, %v1070
      %1894 = vst.msk [vmem:[%s387 + $0x58] sm:$0xff] %vm1868, %v1071
      %1895 = vst.msk [vmem:[%s387 + $0x60] sm:$0xf] %vm1881, %v1072
      %s1896 = smul.u32 13, %s23
      %p1897 = scmp.lt.s32.totalorder %s22, 1
      %s1898 = scalar_select %p1897, %s22, 1
      %p1899 = scmp.lt.s32.totalorder %s1896, 12
      %s1900 = scalar_select %p1899, %s1896, 12
      %s1901 = smul.addr %s1898, 13
      %s1902 = sadd.s32 %s1900, %s1901
      %s1903 = smul.addr %s1902, 8
      %s1904 = scalar_lea.vmem %s4, %s1903
      %s1905 = smul.u32 13, %s23
      %p1906 = scmp.lt.s32.totalorder %s22, 1
      %s1907 = scalar_select %p1906, %s22, 1
      %p1908 = scmp.lt.s32.totalorder %s1905, 12
      %s1909 = scalar_select %p1908, %s1905, 12
      %s1910 = smul.addr %s1907, 13
      %s1911 = sadd.s32 %s1909, %s1910
      %s1912 = smul.addr %s1911, 8
      %s1913 = scalar_lea.vmem %s5, %s1912
      %s1914 = smul.u32 13, %s23
      %p1915 = scmp.lt.s32.totalorder %s22, 1
      %s1916 = scalar_select %p1915, %s22, 1
      %p1917 = scmp.lt.s32.totalorder %s1914, 12
      %s1918 = scalar_select %p1917, %s1914, 12
      %s1919 = smul.addr %s1916, 13
      %s1920 = sadd.s32 %s1918, %s1919
      %s1921 = smul.addr %s1920, 8
      %s1922 = scalar_lea.vmem %s6, %s1921
      // Predicated region
      $region37: #{tpu_custom_call.1} parent=35 // pred_check
        %p1923 = pneg %p156
      $region38: #{tpu_custom_call.1} parent=35 // pred_check_branch
        %1925 = sbr.rel (%p1923) target = $region40
      $region39: #{tpu_custom_call.1} parent=35 // pred_region
        %s1926 = smul.u32 13, %s23
      $region40: #{tpu_custom_call.1} parent=35 // pred_fallthru
        _
      // Predicated region
      $region41: #{tpu_custom_call.1} parent=35 // pred_check
        %p1927 = pneg %p184
      $region42: #{tpu_custom_call.1} parent=35 // pred_check_branch
        %1929 = sbr.rel (%p1927) target = $region44
      $region43: #{tpu_custom_call.1} parent=35 // pred_region
        %s1930 = smul.u32 13, %s23
      $region44: #{tpu_custom_call.1} parent=35 // pred_fallthru
        _
      // Predicated region
      $region45: #{tpu_custom_call.1} parent=35 // pred_check
        %p1931 = pneg %p212
      $region46: #{tpu_custom_call.1} parent=35 // pred_check_branch
        %1933 = sbr.rel (%p1931) target = $region48
      $region47: #{tpu_custom_call.1} parent=35 // pred_region
        %s1934 = smul.u32 13, %s23
      $region48: #{tpu_custom_call.1} parent=35 // pred_fallthru
        _
    $region36: #{tpu_custom_call.1} parent=5 // pred_fallthru
      _
    %p1935 = scmp.le.s32.totalorder 2, %s13
    // Predicated region
    $region49: #{tpu_custom_call.1} parent=5 // pred_check
      %p1936 = pneg %p1935
    $region50: #{tpu_custom_call.1} parent=5 // pred_check_branch
      %1938 = sbr.rel (%p1936) target = $region52
    $region51: #{tpu_custom_call.1} parent=5 // pred_region
      %s1939 = ssub.s32 %s13, 2
      // Predicated region
      $region53: #{tpu_custom_call.1} parent=51 // pred_check
        %p1940 = pneg %p162
      $region54: #{tpu_custom_call.1} parent=51 // pred_check_branch
        %1942 = sbr.rel (%p1940) target = $region56
      $region55: #{tpu_custom_call.1} parent=51 // pred_region
        %s1943 = smul.u32 13, %s25
        %p1944 = scmp.lt.s32.totalorder %s24, 1
        %s1945 = scalar_select %p1944, %s24, 1
        %p1946 = scmp.lt.s32.totalorder %s1943, 12
        %s1947 = scalar_select %p1946, %s1943, 12
        %s1948 = smul.addr %s1945, 13
        %s1949 = sadd.s32 %s1947, %s1948
        %s1950 = smul.addr %s1949, 8
        %s1951 = scalar_lea.vmem %s4, %s1950
      $region56: #{tpu_custom_call.1} parent=51 // pred_fallthru
        _
      // Predicated region
      $region57: #{tpu_custom_call.1} parent=51 // pred_check
        %p1952 = pneg %p190
      $region58: #{tpu_custom_call.1} parent=51 // pred_check_branch
        %1954 = sbr.rel (%p1952) target = $region60
      $region59: #{tpu_custom_call.1} parent=51 // pred_region
        %s1955 = smul.u32 13, %s25
        %p1956 = scmp.lt.s32.totalorder %s24, 1
        %s1957 = scalar_select %p1956, %s24, 1
        %p1958 = scmp.lt.s32.totalorder %s1955, 12
        %s1959 = scalar_select %p1958, %s1955, 12
        %s1960 = smul.addr %s1957, 13
        %s1961 = sadd.s32 %s1959, %s1960
        %s1962 = smul.addr %s1961, 8
        %s1963 = scalar_lea.vmem %s5, %s1962
      $region60: #{tpu_custom_call.1} parent=51 // pred_fallthru
        _
      // Predicated region
      $region61: #{tpu_custom_call.1} parent=51 // pred_check
        %p1964 = pneg %p218
      $region62: #{tpu_custom_call.1} parent=51 // pred_check_branch
        %1966 = sbr.rel (%p1964) target = $region64
      $region63: #{tpu_custom_call.1} parent=51 // pred_region
        %s1967 = smul.u32 13, %s25
        %p1968 = scmp.lt.s32.totalorder %s24, 1
        %s1969 = scalar_select %p1968, %s24, 1
        %p1970 = scmp.lt.s32.totalorder %s1967, 12
        %s1971 = scalar_select %p1970, %s1967, 12
        %s1972 = smul.addr %s1969, 13
        %s1973 = sadd.s32 %s1971, %s1972
        %s1974 = smul.addr %s1973, 8
        %s1975 = scalar_lea.vmem %s6, %s1974
      $region64: #{tpu_custom_call.1} parent=51 // pred_fallthru
        _
    $region52: #{tpu_custom_call.1} parent=5 // pred_fallthru
      _
  $region6: #{tpu_custom_call.1} parent=0 // loop_footer
    %s17 = sadd.s32 1, %s13
  $region7: #{tpu_custom_call.1} parent=0 // loop_footer_branch
    %12 = sbr.rel target = $region3
  $region8: #{tpu_custom_call.1} parent=0 // loop_exit
    _

</llo_original>
